<compile_context>
chip_gen: v6e
topology: v6e:2x2x1
jax: 0.10.0
libtpu: 0.0.40
codegen_flags: <defaults>
</compile_context>

<pallas_src>
import math

import jax
import jax.numpy as jnp
import numpy as np
from jax.experimental import pallas as pl
from jax.experimental.pallas import tpu as pltpu


# -----------------------------------------------------------------------------
# Kernel: full encoder layer for a block of TB sequences per grid step.
# -----------------------------------------------------------------------------
def _make_encoder_kernel(nhead: int, eps: float, exp_in_bf16: bool):
    def kernel(x_ref,
               wqkv_ref, bqkv_ref,          # (D, 3D) bf16, (1, 3D) f32  (q-scale folded in)
               wo_ref, bo_ref,              # (D, D)  bf16, (1, D)  f32
               w1_ref, b1_ref,              # (D, F)  bf16, (1, F)  f32
               w2_ref, b2_ref,              # (F, D)  bf16, (1, D)  f32
               g1_ref, be1_ref, g2_ref, be2_ref,   # LayerNorm params, f32
               o_ref,
               ctx_ref):                    # VMEM scratch (TB*S, D) bf16: merged heads
        TB, S, D = x_ref.shape
        H = nhead
        Dh = D // H
        bf16 = jnp.bfloat16
        f32 = jnp.float32

        x2 = x_ref[...].astype(f32).reshape(TB * S, D)      # residual path stays f32

        # ---- fused QKV projection: one wide bf16 MXU GEMM, f32 accumulate ----
        qkv = jnp.dot(x2.astype(bf16), wqkv_ref[...],
                      preferred_element_type=f32) + bqkv_ref[...]     # (TB*S, 3D) f32

        # ---- attention: one head per (statically unrolled) iteration; the TB
        #      sequences of that head are batched into single 3-D MXU einsums. ----
        for h in range(H):
            lo = h * Dh
            qh = qkv[:, lo:lo + Dh].reshape(TB, S, Dh).astype(bf16)             # (TB,S,Dh)
            kh = qkv[:, D + lo:D + lo + Dh].reshape(TB, S, Dh).astype(bf16)
            vh = qkv[:, 2 * D + lo:2 * D + lo + Dh].reshape(TB, S, Dh).astype(bf16)

            s = jnp.einsum("bqd,bkd->bqk", qh, kh,
                           preferred_element_type=f32)                          # (TB,S,S)
            s = s - jnp.max(s, axis=-1, keepdims=True)
            if exp_in_bf16:                       # bf16 EUP on v6e/v7x
                p = jnp.exp(s.astype(bf16))
            else:                                 # v5e has no bf16 EUP
                p = jnp.exp(s).astype(bf16)
            l = jnp.sum(p.astype(f32), axis=-1, keepdims=True)                  # (TB,S,1)

            ctx = jnp.einsum("bqk,bkd->bqd", p, vh,
                             preferred_element_type=f32)                        # (TB,S,Dh)
            # normalize AFTER the PV matmul (Dh-wide multiply instead of S-wide)
            ctx = ctx * pl.reciprocal(l, approx=True)
            ctx_ref[:, lo:lo + Dh] = ctx.reshape(TB * S, Dh).astype(bf16)

        # ---- output projection: single K=D GEMM over the merged heads ----
        src2 = jnp.dot(ctx_ref[...], wo_ref[...],
                       preferred_element_type=f32) + bo_ref[...]                # (TB*S, D)

        # ---- residual + LayerNorm (f32) ----
        def layer_norm(y, g, b):
            mu = jnp.mean(y, axis=-1, keepdims=True)
            var = jnp.mean((y - mu) * (y - mu), axis=-1, keepdims=True)
            return (y - mu) * jax.lax.rsqrt(var + eps) * g + b

        x1 = layer_norm(x2 + src2, g1_ref[...], be1_ref[...])

        # ---- FFN: linear1 -> relu -> linear2 (bf16 GEMM operands, f32 accumulate) ----
        h1 = jnp.dot(x1.astype(bf16), w1_ref[...],
                     preferred_element_type=f32) + b1_ref[...]
        h1 = jnp.maximum(h1, 0.0).astype(bf16)          # cast right after bias+ReLU
        y2 = jnp.dot(h1, w2_ref[...], preferred_element_type=f32) + b2_ref[...]

        out = layer_norm(x1 + y2, g2_ref[...], be2_ref[...])
        o_ref[...] = out.reshape(TB, S, D).astype(o_ref.dtype)

    return kernel


def _device_kind() -> str:
    try:
        return jax.devices()[0].device_kind.lower()
    except Exception:
        return ""


# -----------------------------------------------------------------------------
# Wrapper: batch-major (B, S, D) core, plus an (S, B, D) shim matching PyTorch.
# -----------------------------------------------------------------------------
def transformer_encoder_layer_bsd(x_bsd, params, nhead, *, block_b=None, eps=1e-5):
    B, S, D = x_bsd.shape
    H = nhead
    assert D % H == 0, "d_model must be divisible by nhead"
    Dh = D // H
    assert S % 8 == 0, "seq len must be sublane-aligned (multiple of 8)"
    F = params["w1"].shape[1]

    # ---- per-generation policy (v5e/v6e: 128 MiB VMEM; v7x: 64 MiB, 2 TCs) ----
    kind = _device_kind()
    is_v7 = "v7" in kind
    exp_in_bf16 = ("v6" in kind) or is_v7           # bf16 EUP on v6e / v7x only
    single_buffer_weights = is_v7                    # weights never change block index
    if is_v7:
        vmem_cap = 48 * 2**20
    elif ("v5" in kind) or ("v6" in kind):
        vmem_cap = 100 * 2**20
    else:
        vmem_cap = 64 * 2**20

    bf16 = jnp.bfloat16
    f32 = jnp.float32

    # ---- host-side weight prep: fused QKV (1/sqrt(Dh) folded into Q), bf16 operands ----
    scale = 1.0 / math.sqrt(Dh)
    wqkv = jnp.concatenate([params["wq"] * scale, params["wk"], params["wv"]],
                           axis=1).astype(bf16)
    bqkv = jnp.concatenate([params["bq"] * scale, params["bk"], params["bv"]],
                           axis=1).astype(f32)

    weight_args = [
        wqkv, bqkv,
        params["wo"].astype(bf16), params["bo"].astype(f32),
        params["w1"].astype(bf16), params["b1"].astype(f32),
        params["w2"].astype(bf16), params["b2"].astype(f32),
        params["g1"].astype(f32), params["be1"].astype(f32),
        params["g2"].astype(f32), params["be2"].astype(f32),
    ]

    def _nbytes(a):
        return int(a.size) * a.dtype.itemsize

    w_bytes = sum(_nbytes(a) for a in weight_args)
    w_buf = 1 if single_buffer_weights else 2

    def _est_bytes(tb):
        io = 2 * 2 * tb * S * D * x_bsd.dtype.itemsize        # in+out blocks, 2x-buffered
        act = tb * S * (26 * D + 6 * F) * 4 + tb * S * S * 8   # f32/bf16 intermediates
        return w_buf * w_bytes + io + act

    # ---- TB: largest divisor of B that keeps grid >= 2 and fits the VMEM budget ----
    if block_b is None:
        limit = max(1, B // 2)
        block_b = 1
        for tb in range(limit, 0, -1):
            if B % tb == 0 and _est_bytes(tb) <= int(0.8 * vmem_cap):
                block_b = tb
                break
    TB = int(block_b)
    assert B % TB == 0, "batch must be divisible by block_b"

    vmem_limit = int(min(vmem_cap, max(16 * 2**20, int(1.3 * _est_bytes(TB)))))

    def const_spec(a):
        nd = a.ndim
        if single_buffer_weights:
            return pl.BlockSpec(a.shape, lambda b, _nd=nd: (0,) * _nd,
                                pipeline_mode=pl.Buffered(1))
        return pl.BlockSpec(a.shape, lambda b, _nd=nd: (0,) * _nd)

    in_specs = [pl.BlockSpec((TB, S, D), lambda b: (b, 0, 0))] + \
               [const_spec(a) for a in weight_args]
    out_spec = pl.BlockSpec((TB, S, D), lambda b: (b, 0, 0))

    out = pl.pallas_call(
        _make_encoder_kernel(nhead, eps, exp_in_bf16),
        out_shape=jax.ShapeDtypeStruct((B, S, D), x_bsd.dtype),
        grid_spec=pltpu.PrefetchScalarGridSpec(
            num_scalar_prefetch=0,
            grid=(B // TB,),
            in_specs=in_specs,
            out_specs=out_spec,
            scratch_shapes=[pltpu.VMEM((TB * S, D), bf16)],    # merged-head context
        ),
        compiler_params=pltpu.CompilerParams(
            dimension_semantics=("parallel",),
            vmem_limit_bytes=vmem_limit,
        ),
    )(x_bsd, *weight_args)
    return out


def transformer_encoder_layer(src_sbd, params, nhead, *, block_b=None):
    """src_sbd: (S, B, D) -- PyTorch nn.MultiheadAttention layout. Returns (S, B, D)."""
    x_bsd = jnp.transpose(src_sbd, (1, 0, 2))
    out_bsd = transformer_encoder_layer_bsd(x_bsd, params, nhead, block_b=block_b)
    return jnp.transpose(out_bsd, (1, 0, 2))


# -----------------------------------------------------------------------------
# Pure-JAX reference: PyTorch forward_post semantics (eval-mode dropout), with the
# same bf16 MXU-operand casts as the kernel (accumulation / norm math in f32).
# -----------------------------------------------------------------------------
def reference_encoder_layer(src_sbd, params, nhead, eps=1e-5):
    S, B, D = src_sbd.shape
    H = nhead
    Dh = D // H
    bf16 = jnp.bfloat16
    f32 = jnp.float32
    x = jnp.transpose(src_sbd, (1, 0, 2)).astype(f32)        # (B, S, D)

    wqkv = jnp.concatenate([params["wq"], params["wk"], params["wv"]], axis=1).astype(bf16)
    bqkv = jnp.concatenate([params["bq"], params["bk"], params["bv"]], axis=1)
    qkv = jnp.einsum("bsd,de->bse", x.astype(bf16), wqkv,
                     preferred_element_type=f32) + bqkv
    q = qkv[..., 0:D] * (1.0 / math.sqrt(Dh))
    k = qkv[..., D:2 * D]
    v = qkv[..., 2 * D:3 * D]

    def split_heads(t):                                       # (B,S,D) -> (B,H,S,Dh)
        return jnp.transpose(t.reshape(B, S, H, Dh), (0, 2, 1, 3))

    qh, kh, vh = (split_heads(q).astype(bf16),
                  split_heads(k).astype(bf16),
                  split_heads(v).astype(bf16))
    s = jnp.einsum("bhqd,bhkd->bhqk", qh, kh, preferred_element_type=f32)
    p = jax.nn.softmax(s, axis=-1)
    ctx = jnp.einsum("bhqk,bhkd->bhqd", p.astype(bf16), vh, preferred_element_type=f32)
    ctx = jnp.transpose(ctx, (0, 2, 1, 3)).reshape(B, S, D)
    src2 = jnp.einsum("bsd,de->bse", ctx.astype(bf16), params["wo"].astype(bf16),
                      preferred_element_type=f32) + params["bo"]

    def ln(y, g, b):
        mu = jnp.mean(y, axis=-1, keepdims=True)
        var = jnp.mean((y - mu) ** 2, axis=-1, keepdims=True)
        return (y - mu) * jax.lax.rsqrt(var + eps) * g + b

    x1 = ln(x + src2, params["g1"], params["be1"])
    h1 = jnp.maximum(jnp.einsum("bsd,df->bsf", x1.astype(bf16), params["w1"].astype(bf16),
                                preferred_element_type=f32) + params["b1"], 0.0)
    y2 = jnp.einsum("bsf,fd->bsd", h1.astype(bf16), params["w2"].astype(bf16),
                    preferred_element_type=f32) + params["b2"]
    out = ln(x1 + y2, params["g2"], params["be2"])
    return jnp.transpose(out, (1, 0, 2))


# -----------------------------------------------------------------------------
# Deterministic parameter init (weights stored as (in_features, out_features)).
# -----------------------------------------------------------------------------
def init_params(key, d_model, nhead, dim_feedforward):
    keys = jax.random.split(key, 8)
    f = 0.05
    wq = f * jax.random.normal(keys[0], (d_model, d_model), jnp.float32)
    wk = f * jax.random.normal(keys[1], (d_model, d_model), jnp.float32)
    wv = f * jax.random.normal(keys[2], (d_model, d_model), jnp.float32)
    wo = f * jax.random.normal(keys[3], (d_model, d_model), jnp.float32)
    w1 = f * jax.random.normal(keys[4], (d_model, dim_feedforward), jnp.float32)
    w2 = f * jax.random.normal(keys[5], (dim_feedforward, d_model), jnp.float32)
    bq = 0.01 * jax.random.normal(keys[6], (1, d_model), jnp.float32)
    bk = jnp.zeros((1, d_model), jnp.float32)
    bv = 0.01 * jax.random.normal(keys[7], (1, d_model), jnp.float32)
    bo = jnp.zeros((1, d_model), jnp.float32)
    b1 = jnp.zeros((1, dim_feedforward), jnp.float32)
    b2 = jnp.zeros((1, d_model), jnp.float32)
    g1 = jnp.ones((1, d_model), jnp.float32)
    be1 = jnp.zeros((1, d_model), jnp.float32)
    g2 = jnp.ones((1, d_model), jnp.float32)
    be2 = jnp.zeros((1, d_model), jnp.float32)
    return dict(wq=wq, wk=wk, wv=wv, bq=bq, bk=bk, bv=bv, wo=wo, bo=bo,
                w1=w1, b1=b1, w2=w2, b2=b2, g1=g1, be1=be1, g2=g2, be2=be2)


if __name__ == "__main__":
    # Small smoke-test shapes. Production shapes should use D a multiple of 128,
    # Dh in {64, 128} and S a multiple of 128 for lane-dense tiles / MXU occupancy.
    d_model, nhead, dim_feedforward = 32, 4, 64
    S, B = 8, 4                                   # default heuristic -> TB=2, grid=2

    key = jax.random.PRNGKey(0)
    k_x, k_p = jax.random.split(key)
    src = jax.random.normal(k_x, (S, B, d_model), jnp.float32)   # (seq, batch, d_model)
    params = init_params(k_p, d_model, nhead, dim_feedforward)

    out = transformer_encoder_layer(src, params, nhead)
    out = jax.block_until_ready(out)

    ref = reference_encoder_layer(src, params, nhead)
    # Tolerance covers bf16 MXU operands, bf16 probabilities / (v6e+) bf16 exp, and the
    # approx-reciprocal softmax normalization; it will not bit-match PyTorch.
    np.testing.assert_allclose(np.asarray(out), np.asarray(ref), rtol=1e-2, atol=1e-2)

    print("KERNEL_OK")
</pallas_src>

<mosaic_0001>
module attributes {stable_mosaic.version = 11 : i64} {
  func.func @kernel(%arg0: i32, %arg1: memref<2x8x32xf32, #tpu.memory_space<vmem>>, %arg2: memref<32x96xbf16, #tpu.memory_space<vmem>>, %arg3: memref<1x96xf32, #tpu.memory_space<vmem>>, %arg4: memref<32x32xbf16, #tpu.memory_space<vmem>>, %arg5: memref<1x32xf32, #tpu.memory_space<vmem>>, %arg6: memref<32x64xbf16, #tpu.memory_space<vmem>>, %arg7: memref<1x64xf32, #tpu.memory_space<vmem>>, %arg8: memref<64x32xbf16, #tpu.memory_space<vmem>>, %arg9: memref<1x32xf32, #tpu.memory_space<vmem>>, %arg10: memref<1x32xf32, #tpu.memory_space<vmem>>, %arg11: memref<1x32xf32, #tpu.memory_space<vmem>>, %arg12: memref<1x32xf32, #tpu.memory_space<vmem>>, %arg13: memref<1x32xf32, #tpu.memory_space<vmem>>, %arg14: memref<2x8x32xf32, #tpu.memory_space<vmem>>, %arg15: memref<16x32xbf16, #tpu.memory_space<vmem>>) attributes {dimension_semantics = [#tpu.dimension_semantics<parallel>], iteration_bounds = array<i64: 2>, scalar_prefetch = 0 : i64, scratch_operands = 1 : i64, tpu.core_type = #tpu.core_type<tc>, window_params = [{transform_indices = @transform_0, window_bounds = array<i64: 2, 8, 32>}, {pipeline_mode = #tpu.pipeline_mode<synchronous>, transform_indices = @transform_1, window_bounds = array<i64: 32, 96>}, {pipeline_mode = #tpu.pipeline_mode<synchronous>, transform_indices = @transform_2, window_bounds = array<i64: 1, 96>}, {pipeline_mode = #tpu.pipeline_mode<synchronous>, transform_indices = @transform_3, window_bounds = array<i64: 32, 32>}, {pipeline_mode = #tpu.pipeline_mode<synchronous>, transform_indices = @transform_4, window_bounds = array<i64: 1, 32>}, {pipeline_mode = #tpu.pipeline_mode<synchronous>, transform_indices = @transform_5, window_bounds = array<i64: 32, 64>}, {pipeline_mode = #tpu.pipeline_mode<synchronous>, transform_indices = @transform_6, window_bounds = array<i64: 1, 64>}, {pipeline_mode = #tpu.pipeline_mode<synchronous>, transform_indices = @transform_7, window_bounds = array<i64: 64, 32>}, {pipeline_mode = #tpu.pipeline_mode<synchronous>, transform_indices = @transform_8, window_bounds = array<i64: 1, 32>}, {pipeline_mode = #tpu.pipeline_mode<synchronous>, transform_indices = @transform_9, window_bounds = array<i64: 1, 32>}, {pipeline_mode = #tpu.pipeline_mode<synchronous>, transform_indices = @transform_10, window_bounds = array<i64: 1, 32>}, {pipeline_mode = #tpu.pipeline_mode<synchronous>, transform_indices = @transform_11, window_bounds = array<i64: 1, 32>}, {pipeline_mode = #tpu.pipeline_mode<synchronous>, transform_indices = @transform_12, window_bounds = array<i64: 1, 32>}, {transform_indices = @transform_13, window_bounds = array<i64: 2, 8, 32>}]} {
    %c0 = arith.constant 0 : index
    %c0_0 = arith.constant 0 : index
    %c0_1 = arith.constant 0 : index
    %0 = vector.load %arg1[%c0, %c0_0, %c0_1] : memref<2x8x32xf32, #tpu.memory_space<vmem>>, vector<2x8x32xf32>
    %1 = vector.shape_cast %0 : vector<2x8x32xf32> to vector<16x32xf32>
    %2 = arith.truncf %1 : vector<16x32xf32> to vector<16x32xbf16>
    %c0_2 = arith.constant 0 : index
    %c0_3 = arith.constant 0 : index
    %3 = vector.load %arg2[%c0_2, %c0_3] : memref<32x96xbf16, #tpu.memory_space<vmem>>, vector<32x96xbf16>
    %cst = arith.constant dense<0.000000e+00> : vector<16x96xf32>
    %4 = tpu.matmul %2, %3, %cst {dimension_numbers = #tpu.dot_dimension_numbers<[1], [0], [0], [1], [0, 0, 1, 1], [], []>} : vector<16x32xbf16>, vector<32x96xbf16>, vector<16x96xf32> -> vector<16x96xf32>
    %c0_4 = arith.constant 0 : index
    %c0_5 = arith.constant 0 : index
    %5 = vector.load %arg3[%c0_4, %c0_5] : memref<1x96xf32, #tpu.memory_space<vmem>>, vector<1x96xf32>
    %6 = vector.broadcast %5 : vector<1x96xf32> to vector<16x96xf32>
    %7 = arith.addf %4, %6 : vector<16x96xf32>
    %8 = vector.extract_strided_slice %7 {offsets = [0, 0], sizes = [16, 8], strides = [1, 1]} : vector<16x96xf32> to vector<16x8xf32>
    %9 = vector.shape_cast %8 : vector<16x8xf32> to vector<2x8x8xf32>
    %10 = arith.truncf %9 : vector<2x8x8xf32> to vector<2x8x8xbf16>
    %11 = vector.extract_strided_slice %7 {offsets = [0, 32], sizes = [16, 8], strides = [1, 1]} : vector<16x96xf32> to vector<16x8xf32>
    %12 = vector.shape_cast %11 : vector<16x8xf32> to vector<2x8x8xf32>
    %13 = arith.truncf %12 : vector<2x8x8xf32> to vector<2x8x8xbf16>
    %14 = vector.extract_strided_slice %7 {offsets = [0, 64], sizes = [16, 8], strides = [1, 1]} : vector<16x96xf32> to vector<16x8xf32>
    %15 = vector.shape_cast %14 : vector<16x8xf32> to vector<2x8x8xf32>
    %16 = arith.truncf %15 : vector<2x8x8xf32> to vector<2x8x8xbf16>
    "tpu.trace_start"() <{level = 10 : i32, message = "bqd,bkd->bqk"}> : () -> ()
    %cst_6 = arith.constant dense<0.000000e+00> : vector<2x8x8xf32>
    %17 = tpu.matmul %10, %13, %cst_6 {dimension_numbers = #tpu.dot_dimension_numbers<[2], [2], [1], [1], [0, 0, 0, 1, 1, 1], [0], [0]>} : vector<2x8x8xbf16>, vector<2x8x8xbf16>, vector<2x8x8xf32> -> vector<2x8x8xf32>
    "tpu.trace_stop"() : () -> ()
    %cst_7 = arith.constant dense<0xFF800000> : vector<2x8xf32>
    %18 = vector.multi_reduction <maximumf>, %17, %cst_7 [2] : vector<2x8x8xf32> to vector<2x8xf32>
    %19 = vector.shape_cast %18 : vector<2x8xf32> to vector<2x8x1xf32>
    %20 = vector.broadcast %19 : vector<2x8x1xf32> to vector<2x8x8xf32>
    %21 = arith.subf %17, %20 : vector<2x8x8xf32>
    %22 = math.exp %21 : vector<2x8x8xf32>
    %23 = arith.truncf %22 : vector<2x8x8xf32> to vector<2x8x8xbf16>
    %24 = arith.extf %23 : vector<2x8x8xbf16> to vector<2x8x8xf32>
    %cst_8 = arith.constant dense<0.000000e+00> : vector<2x8xf32>
    %25 = vector.multi_reduction <add>, %24, %cst_8 [2] : vector<2x8x8xf32> to vector<2x8xf32>
    %26 = vector.shape_cast %25 : vector<2x8xf32> to vector<2x8x1xf32>
    "tpu.trace_start"() <{level = 10 : i32, message = "bqk,bkd->bqd"}> : () -> ()
    %cst_9 = arith.constant dense<0.000000e+00> : vector<2x8x8xf32>
    %27 = tpu.matmul %23, %16, %cst_9 {dimension_numbers = #tpu.dot_dimension_numbers<[2], [1], [1], [2], [0, 0, 0, 1, 1, 2], [0], [0]>} : vector<2x8x8xbf16>, vector<2x8x8xbf16>, vector<2x8x8xf32> -> vector<2x8x8xf32>
    "tpu.trace_stop"() : () -> ()
    %28 = tpu.reciprocal %26 {approx = true} : vector<2x8x1xf32> -> vector<2x8x1xf32>
    %29 = vector.broadcast %28 : vector<2x8x1xf32> to vector<2x8x8xf32>
    %30 = arith.mulf %27, %29 : vector<2x8x8xf32>
    %31 = vector.shape_cast %30 : vector<2x8x8xf32> to vector<16x8xf32>
    %32 = arith.truncf %31 : vector<16x8xf32> to vector<16x8xbf16>
    %c0_10 = arith.constant 0 : index
    %c0_11 = arith.constant 0 : index
    %33 = vector.load %arg15[%c0_10, %c0_11] : memref<16x32xbf16, #tpu.memory_space<vmem>>, vector<16x8xbf16>
    tpu.vector_store %arg15[%c0_10, %c0_11], %32 {strides = array<i32>} : memref<16x32xbf16, #tpu.memory_space<vmem>>, vector<16x8xbf16>,
    %34 = vector.extract_strided_slice %7 {offsets = [0, 8], sizes = [16, 8], strides = [1, 1]} : vector<16x96xf32> to vector<16x8xf32>
    %35 = vector.shape_cast %34 : vector<16x8xf32> to vector<2x8x8xf32>
    %36 = arith.truncf %35 : vector<2x8x8xf32> to vector<2x8x8xbf16>
    %37 = vector.extract_strided_slice %7 {offsets = [0, 40], sizes = [16, 8], strides = [1, 1]} : vector<16x96xf32> to vector<16x8xf32>
    %38 = vector.shape_cast %37 : vector<16x8xf32> to vector<2x8x8xf32>
    %39 = arith.truncf %38 : vector<2x8x8xf32> to vector<2x8x8xbf16>
    %40 = vector.extract_strided_slice %7 {offsets = [0, 72], sizes = [16, 8], strides = [1, 1]} : vector<16x96xf32> to vector<16x8xf32>
    %41 = vector.shape_cast %40 : vector<16x8xf32> to vector<2x8x8xf32>
    %42 = arith.truncf %41 : vector<2x8x8xf32> to vector<2x8x8xbf16>
    "tpu.trace_start"() <{level = 10 : i32, message = "bqd,bkd->bqk"}> : () -> ()
    %cst_12 = arith.constant dense<0.000000e+00> : vector<2x8x8xf32>
    %43 = tpu.matmul %36, %39, %cst_12 {dimension_numbers = #tpu.dot_dimension_numbers<[2], [2], [1], [1], [0, 0, 0, 1, 1, 1], [0], [0]>} : vector<2x8x8xbf16>, vector<2x8x8xbf16>, vector<2x8x8xf32> -> vector<2x8x8xf32>
    "tpu.trace_stop"() : () -> ()
    %cst_13 = arith.constant dense<0xFF800000> : vector<2x8xf32>
    %44 = vector.multi_reduction <maximumf>, %43, %cst_13 [2] : vector<2x8x8xf32> to vector<2x8xf32>
    %45 = vector.shape_cast %44 : vector<2x8xf32> to vector<2x8x1xf32>
    %46 = vector.broadcast %45 : vector<2x8x1xf32> to vector<2x8x8xf32>
    %47 = arith.subf %43, %46 : vector<2x8x8xf32>
    %48 = math.exp %47 : vector<2x8x8xf32>
    %49 = arith.truncf %48 : vector<2x8x8xf32> to vector<2x8x8xbf16>
    %50 = arith.extf %49 : vector<2x8x8xbf16> to vector<2x8x8xf32>
    %cst_14 = arith.constant dense<0.000000e+00> : vector<2x8xf32>
    %51 = vector.multi_reduction <add>, %50, %cst_14 [2] : vector<2x8x8xf32> to vector<2x8xf32>
    %52 = vector.shape_cast %51 : vector<2x8xf32> to vector<2x8x1xf32>
    "tpu.trace_start"() <{level = 10 : i32, message = "bqk,bkd->bqd"}> : () -> ()
    %cst_15 = arith.constant dense<0.000000e+00> : vector<2x8x8xf32>
    %53 = tpu.matmul %49, %42, %cst_15 {dimension_numbers = #tpu.dot_dimension_numbers<[2], [1], [1], [2], [0, 0, 0, 1, 1, 2], [0], [0]>} : vector<2x8x8xbf16>, vector<2x8x8xbf16>, vector<2x8x8xf32> -> vector<2x8x8xf32>
    "tpu.trace_stop"() : () -> ()
    %54 = tpu.reciprocal %52 {approx = true} : vector<2x8x1xf32> -> vector<2x8x1xf32>
    %55 = vector.broadcast %54 : vector<2x8x1xf32> to vector<2x8x8xf32>
    %56 = arith.mulf %53, %55 : vector<2x8x8xf32>
    %57 = vector.shape_cast %56 : vector<2x8x8xf32> to vector<16x8xf32>
    %58 = arith.truncf %57 : vector<16x8xf32> to vector<16x8xbf16>
    %c0_16 = arith.constant 0 : index
    %c8 = arith.constant 8 : index
    %59 = vector.load %arg15[%c0_16, %c8] : memref<16x32xbf16, #tpu.memory_space<vmem>>, vector<16x8xbf16>
    tpu.vector_store %arg15[%c0_16, %c8], %58 {strides = array<i32>} : memref<16x32xbf16, #tpu.memory_space<vmem>>, vector<16x8xbf16>,
    %60 = vector.extract_strided_slice %7 {offsets = [0, 16], sizes = [16, 8], strides = [1, 1]} : vector<16x96xf32> to vector<16x8xf32>
    %61 = vector.shape_cast %60 : vector<16x8xf32> to vector<2x8x8xf32>
    %62 = arith.truncf %61 : vector<2x8x8xf32> to vector<2x8x8xbf16>
    %63 = vector.extract_strided_slice %7 {offsets = [0, 48], sizes = [16, 8], strides = [1, 1]} : vector<16x96xf32> to vector<16x8xf32>
    %64 = vector.shape_cast %63 : vector<16x8xf32> to vector<2x8x8xf32>
    %65 = arith.truncf %64 : vector<2x8x8xf32> to vector<2x8x8xbf16>
    %66 = vector.extract_strided_slice %7 {offsets = [0, 80], sizes = [16, 8], strides = [1, 1]} : vector<16x96xf32> to vector<16x8xf32>
    %67 = vector.shape_cast %66 : vector<16x8xf32> to vector<2x8x8xf32>
    %68 = arith.truncf %67 : vector<2x8x8xf32> to vector<2x8x8xbf16>
    "tpu.trace_start"() <{level = 10 : i32, message = "bqd,bkd->bqk"}> : () -> ()
    %cst_17 = arith.constant dense<0.000000e+00> : vector<2x8x8xf32>
    %69 = tpu.matmul %62, %65, %cst_17 {dimension_numbers = #tpu.dot_dimension_numbers<[2], [2], [1], [1], [0, 0, 0, 1, 1, 1], [0], [0]>} : vector<2x8x8xbf16>, vector<2x8x8xbf16>, vector<2x8x8xf32> -> vector<2x8x8xf32>
    "tpu.trace_stop"() : () -> ()
    %cst_18 = arith.constant dense<0xFF800000> : vector<2x8xf32>
    %70 = vector.multi_reduction <maximumf>, %69, %cst_18 [2] : vector<2x8x8xf32> to vector<2x8xf32>
    %71 = vector.shape_cast %70 : vector<2x8xf32> to vector<2x8x1xf32>
    %72 = vector.broadcast %71 : vector<2x8x1xf32> to vector<2x8x8xf32>
    %73 = arith.subf %69, %72 : vector<2x8x8xf32>
    %74 = math.exp %73 : vector<2x8x8xf32>
    %75 = arith.truncf %74 : vector<2x8x8xf32> to vector<2x8x8xbf16>
    %76 = arith.extf %75 : vector<2x8x8xbf16> to vector<2x8x8xf32>
    %cst_19 = arith.constant dense<0.000000e+00> : vector<2x8xf32>
    %77 = vector.multi_reduction <add>, %76, %cst_19 [2] : vector<2x8x8xf32> to vector<2x8xf32>
    %78 = vector.shape_cast %77 : vector<2x8xf32> to vector<2x8x1xf32>
    "tpu.trace_start"() <{level = 10 : i32, message = "bqk,bkd->bqd"}> : () -> ()
    %cst_20 = arith.constant dense<0.000000e+00> : vector<2x8x8xf32>
    %79 = tpu.matmul %75, %68, %cst_20 {dimension_numbers = #tpu.dot_dimension_numbers<[2], [1], [1], [2], [0, 0, 0, 1, 1, 2], [0], [0]>} : vector<2x8x8xbf16>, vector<2x8x8xbf16>, vector<2x8x8xf32> -> vector<2x8x8xf32>
    "tpu.trace_stop"() : () -> ()
    %80 = tpu.reciprocal %78 {approx = true} : vector<2x8x1xf32> -> vector<2x8x1xf32>
    %81 = vector.broadcast %80 : vector<2x8x1xf32> to vector<2x8x8xf32>
    %82 = arith.mulf %79, %81 : vector<2x8x8xf32>
    %83 = vector.shape_cast %82 : vector<2x8x8xf32> to vector<16x8xf32>
    %84 = arith.truncf %83 : vector<16x8xf32> to vector<16x8xbf16>
    %c0_21 = arith.constant 0 : index
    %c16 = arith.constant 16 : index
    %85 = vector.load %arg15[%c0_21, %c16] : memref<16x32xbf16, #tpu.memory_space<vmem>>, vector<16x8xbf16>
    tpu.vector_store %arg15[%c0_21, %c16], %84 {strides = array<i32>} : memref<16x32xbf16, #tpu.memory_space<vmem>>, vector<16x8xbf16>,
    %86 = vector.extract_strided_slice %7 {offsets = [0, 24], sizes = [16, 8], strides = [1, 1]} : vector<16x96xf32> to vector<16x8xf32>
    %87 = vector.shape_cast %86 : vector<16x8xf32> to vector<2x8x8xf32>
    %88 = arith.truncf %87 : vector<2x8x8xf32> to vector<2x8x8xbf16>
    %89 = vector.extract_strided_slice %7 {offsets = [0, 56], sizes = [16, 8], strides = [1, 1]} : vector<16x96xf32> to vector<16x8xf32>
    %90 = vector.shape_cast %89 : vector<16x8xf32> to vector<2x8x8xf32>
    %91 = arith.truncf %90 : vector<2x8x8xf32> to vector<2x8x8xbf16>
    %92 = vector.extract_strided_slice %7 {offsets = [0, 88], sizes = [16, 8], strides = [1, 1]} : vector<16x96xf32> to vector<16x8xf32>
    %93 = vector.shape_cast %92 : vector<16x8xf32> to vector<2x8x8xf32>
    %94 = arith.truncf %93 : vector<2x8x8xf32> to vector<2x8x8xbf16>
    "tpu.trace_start"() <{level = 10 : i32, message = "bqd,bkd->bqk"}> : () -> ()
    %cst_22 = arith.constant dense<0.000000e+00> : vector<2x8x8xf32>
    %95 = tpu.matmul %88, %91, %cst_22 {dimension_numbers = #tpu.dot_dimension_numbers<[2], [2], [1], [1], [0, 0, 0, 1, 1, 1], [0], [0]>} : vector<2x8x8xbf16>, vector<2x8x8xbf16>, vector<2x8x8xf32> -> vector<2x8x8xf32>
    "tpu.trace_stop"() : () -> ()
    %cst_23 = arith.constant dense<0xFF800000> : vector<2x8xf32>
    %96 = vector.multi_reduction <maximumf>, %95, %cst_23 [2] : vector<2x8x8xf32> to vector<2x8xf32>
    %97 = vector.shape_cast %96 : vector<2x8xf32> to vector<2x8x1xf32>
    %98 = vector.broadcast %97 : vector<2x8x1xf32> to vector<2x8x8xf32>
    %99 = arith.subf %95, %98 : vector<2x8x8xf32>
    %100 = math.exp %99 : vector<2x8x8xf32>
    %101 = arith.truncf %100 : vector<2x8x8xf32> to vector<2x8x8xbf16>
    %102 = arith.extf %101 : vector<2x8x8xbf16> to vector<2x8x8xf32>
    %cst_24 = arith.constant dense<0.000000e+00> : vector<2x8xf32>
    %103 = vector.multi_reduction <add>, %102, %cst_24 [2] : vector<2x8x8xf32> to vector<2x8xf32>
    %104 = vector.shape_cast %103 : vector<2x8xf32> to vector<2x8x1xf32>
    "tpu.trace_start"() <{level = 10 : i32, message = "bqk,bkd->bqd"}> : () -> ()
    %cst_25 = arith.constant dense<0.000000e+00> : vector<2x8x8xf32>
    %105 = tpu.matmul %101, %94, %cst_25 {dimension_numbers = #tpu.dot_dimension_numbers<[2], [1], [1], [2], [0, 0, 0, 1, 1, 2], [0], [0]>} : vector<2x8x8xbf16>, vector<2x8x8xbf16>, vector<2x8x8xf32> -> vector<2x8x8xf32>
    "tpu.trace_stop"() : () -> ()
    %106 = tpu.reciprocal %104 {approx = true} : vector<2x8x1xf32> -> vector<2x8x1xf32>
    %107 = vector.broadcast %106 : vector<2x8x1xf32> to vector<2x8x8xf32>
    %108 = arith.mulf %105, %107 : vector<2x8x8xf32>
    %109 = vector.shape_cast %108 : vector<2x8x8xf32> to vector<16x8xf32>
    %110 = arith.truncf %109 : vector<16x8xf32> to vector<16x8xbf16>
    %c0_26 = arith.constant 0 : index
    %c24 = arith.constant 24 : index
    %111 = vector.load %arg15[%c0_26, %c24] : memref<16x32xbf16, #tpu.memory_space<vmem>>, vector<16x8xbf16>
    tpu.vector_store %arg15[%c0_26, %c24], %110 {strides = array<i32>} : memref<16x32xbf16, #tpu.memory_space<vmem>>, vector<16x8xbf16>,
    %c0_27 = arith.constant 0 : index
    %c0_28 = arith.constant 0 : index
    %112 = vector.load %arg15[%c0_27, %c0_28] : memref<16x32xbf16, #tpu.memory_space<vmem>>, vector<16x32xbf16>
    %c0_29 = arith.constant 0 : index
    %c0_30 = arith.constant 0 : index
    %113 = vector.load %arg4[%c0_29, %c0_30] : memref<32x32xbf16, #tpu.memory_space<vmem>>, vector<32x32xbf16>
    %cst_31 = arith.constant dense<0.000000e+00> : vector<16x32xf32>
    %114 = tpu.matmul %112, %113, %cst_31 {dimension_numbers = #tpu.dot_dimension_numbers<[1], [0], [0], [1], [0, 0, 1, 1], [], []>} : vector<16x32xbf16>, vector<32x32xbf16>, vector<16x32xf32> -> vector<16x32xf32>
    %c0_32 = arith.constant 0 : index
    %c0_33 = arith.constant 0 : index
    %115 = vector.load %arg5[%c0_32, %c0_33] : memref<1x32xf32, #tpu.memory_space<vmem>>, vector<1x32xf32>
    %116 = vector.broadcast %115 : vector<1x32xf32> to vector<16x32xf32>
    %117 = arith.addf %114, %116 : vector<16x32xf32>
    %118 = arith.addf %1, %117 : vector<16x32xf32>
    %c0_34 = arith.constant 0 : index
    %c0_35 = arith.constant 0 : index
    %119 = vector.load %arg10[%c0_34, %c0_35] : memref<1x32xf32, #tpu.memory_space<vmem>>, vector<1x32xf32>
    %c0_36 = arith.constant 0 : index
    %c0_37 = arith.constant 0 : index
    %120 = vector.load %arg11[%c0_36, %c0_37] : memref<1x32xf32, #tpu.memory_space<vmem>>, vector<1x32xf32>
    %cst_38 = arith.constant dense<0.000000e+00> : vector<16xf32>
    %121 = vector.multi_reduction <add>, %118, %cst_38 [1] : vector<16x32xf32> to vector<16xf32>
    %122 = vector.shape_cast %121 : vector<16xf32> to vector<16x1xf32>
    %cst_39 = arith.constant 3.200000e+01 : f32
    %123 = vector.broadcast %cst_39 : f32 to vector<16x1xf32>
    %124 = arith.divf %122, %123 : vector<16x1xf32>
    %125 = vector.broadcast %124 : vector<16x1xf32> to vector<16x32xf32>
    %126 = arith.subf %118, %125 : vector<16x32xf32>
    %127 = vector.broadcast %124 : vector<16x1xf32> to vector<16x32xf32>
    %128 = arith.subf %118, %127 : vector<16x32xf32>
    %129 = arith.mulf %126, %128 : vector<16x32xf32>
    %cst_40 = arith.constant dense<0.000000e+00> : vector<16xf32>
    %130 = vector.multi_reduction <add>, %129, %cst_40 [1] : vector<16x32xf32> to vector<16xf32>
    %131 = vector.shape_cast %130 : vector<16xf32> to vector<16x1xf32>
    %cst_41 = arith.constant 3.200000e+01 : f32
    %132 = vector.broadcast %cst_41 : f32 to vector<16x1xf32>
    %133 = arith.divf %131, %132 : vector<16x1xf32>
    %134 = vector.broadcast %124 : vector<16x1xf32> to vector<16x32xf32>
    %135 = arith.subf %118, %134 : vector<16x32xf32>
    %cst_42 = arith.constant 9.99999974E-6 : f32
    %136 = vector.broadcast %cst_42 : f32 to vector<16x1xf32>
    %137 = arith.addf %133, %136 : vector<16x1xf32>
    %138 = math.rsqrt %137 : vector<16x1xf32>
    %139 = vector.broadcast %138 : vector<16x1xf32> to vector<16x32xf32>
    %140 = arith.mulf %135, %139 : vector<16x32xf32>
    %141 = vector.broadcast %119 : vector<1x32xf32> to vector<16x32xf32>
    %142 = arith.mulf %140, %141 : vector<16x32xf32>
    %143 = vector.broadcast %120 : vector<1x32xf32> to vector<16x32xf32>
    %144 = arith.addf %142, %143 : vector<16x32xf32>
    %145 = arith.truncf %144 : vector<16x32xf32> to vector<16x32xbf16>
    %c0_43 = arith.constant 0 : index
    %c0_44 = arith.constant 0 : index
    %146 = vector.load %arg6[%c0_43, %c0_44] : memref<32x64xbf16, #tpu.memory_space<vmem>>, vector<32x64xbf16>
    %cst_45 = arith.constant dense<0.000000e+00> : vector<16x64xf32>
    %147 = tpu.matmul %145, %146, %cst_45 {dimension_numbers = #tpu.dot_dimension_numbers<[1], [0], [0], [1], [0, 0, 1, 1], [], []>} : vector<16x32xbf16>, vector<32x64xbf16>, vector<16x64xf32> -> vector<16x64xf32>
    %c0_46 = arith.constant 0 : index
    %c0_47 = arith.constant 0 : index
    %148 = vector.load %arg7[%c0_46, %c0_47] : memref<1x64xf32, #tpu.memory_space<vmem>>, vector<1x64xf32>
    %149 = vector.broadcast %148 : vector<1x64xf32> to vector<16x64xf32>
    %150 = arith.addf %147, %149 : vector<16x64xf32>
    %cst_48 = arith.constant 0.000000e+00 : f32
    %151 = vector.broadcast %cst_48 : f32 to vector<16x64xf32>
    %152 = arith.maximumf %150, %151 : vector<16x64xf32>
    %153 = arith.truncf %152 : vector<16x64xf32> to vector<16x64xbf16>
    %c0_49 = arith.constant 0 : index
    %c0_50 = arith.constant 0 : index
    %154 = vector.load %arg8[%c0_49, %c0_50] : memref<64x32xbf16, #tpu.memory_space<vmem>>, vector<64x32xbf16>
    %cst_51 = arith.constant dense<0.000000e+00> : vector<16x32xf32>
    %155 = tpu.matmul %153, %154, %cst_51 {dimension_numbers = #tpu.dot_dimension_numbers<[1], [0], [0], [1], [0, 0, 1, 1], [], []>} : vector<16x64xbf16>, vector<64x32xbf16>, vector<16x32xf32> -> vector<16x32xf32>
    %c0_52 = arith.constant 0 : index
    %c0_53 = arith.constant 0 : index
    %156 = vector.load %arg9[%c0_52, %c0_53] : memref<1x32xf32, #tpu.memory_space<vmem>>, vector<1x32xf32>
    %157 = vector.broadcast %156 : vector<1x32xf32> to vector<16x32xf32>
    %158 = arith.addf %155, %157 : vector<16x32xf32>
    %159 = arith.addf %144, %158 : vector<16x32xf32>
    %c0_54 = arith.constant 0 : index
    %c0_55 = arith.constant 0 : index
    %160 = vector.load %arg12[%c0_54, %c0_55] : memref<1x32xf32, #tpu.memory_space<vmem>>, vector<1x32xf32>
    %c0_56 = arith.constant 0 : index
    %c0_57 = arith.constant 0 : index
    %161 = vector.load %arg13[%c0_56, %c0_57] : memref<1x32xf32, #tpu.memory_space<vmem>>, vector<1x32xf32>
    %cst_58 = arith.constant dense<0.000000e+00> : vector<16xf32>
    %162 = vector.multi_reduction <add>, %159, %cst_58 [1] : vector<16x32xf32> to vector<16xf32>
    %163 = vector.shape_cast %162 : vector<16xf32> to vector<16x1xf32>
    %cst_59 = arith.constant 3.200000e+01 : f32
    %164 = vector.broadcast %cst_59 : f32 to vector<16x1xf32>
    %165 = arith.divf %163, %164 : vector<16x1xf32>
    %166 = vector.broadcast %165 : vector<16x1xf32> to vector<16x32xf32>
    %167 = arith.subf %159, %166 : vector<16x32xf32>
    %168 = vector.broadcast %165 : vector<16x1xf32> to vector<16x32xf32>
    %169 = arith.subf %159, %168 : vector<16x32xf32>
    %170 = arith.mulf %167, %169 : vector<16x32xf32>
    %cst_60 = arith.constant dense<0.000000e+00> : vector<16xf32>
    %171 = vector.multi_reduction <add>, %170, %cst_60 [1] : vector<16x32xf32> to vector<16xf32>
    %172 = vector.shape_cast %171 : vector<16xf32> to vector<16x1xf32>
    %cst_61 = arith.constant 3.200000e+01 : f32
    %173 = vector.broadcast %cst_61 : f32 to vector<16x1xf32>
    %174 = arith.divf %172, %173 : vector<16x1xf32>
    %175 = vector.broadcast %165 : vector<16x1xf32> to vector<16x32xf32>
    %176 = arith.subf %159, %175 : vector<16x32xf32>
    %cst_62 = arith.constant 9.99999974E-6 : f32
    %177 = vector.broadcast %cst_62 : f32 to vector<16x1xf32>
    %178 = arith.addf %174, %177 : vector<16x1xf32>
    %179 = math.rsqrt %178 : vector<16x1xf32>
    %180 = vector.broadcast %179 : vector<16x1xf32> to vector<16x32xf32>
    %181 = arith.mulf %176, %180 : vector<16x32xf32>
    %182 = vector.broadcast %160 : vector<1x32xf32> to vector<16x32xf32>
    %183 = arith.mulf %181, %182 : vector<16x32xf32>
    %184 = vector.broadcast %161 : vector<1x32xf32> to vector<16x32xf32>
    %185 = arith.addf %183, %184 : vector<16x32xf32>
    %186 = vector.shape_cast %185 : vector<16x32xf32> to vector<2x8x32xf32>
    %c0_63 = arith.constant 0 : index
    %c0_64 = arith.constant 0 : index
    %c0_65 = arith.constant 0 : index
    %187 = vector.load %arg14[%c0_63, %c0_64, %c0_65] : memref<2x8x32xf32, #tpu.memory_space<vmem>>, vector<2x8x32xf32>
    tpu.vector_store %arg14[%c0_63, %c0_64, %c0_65], %186 {strides = array<i32>} : memref<2x8x32xf32, #tpu.memory_space<vmem>>, vector<2x8x32xf32>,
    return
  }
  func.func @transform_0(%arg0: i32) -> (i32, i32, i32) {
    %c0_i32 = arith.constant 0 : i32
    %c0_i32_0 = arith.constant 0 : i32
    %c0_i32_1 = arith.constant 0 : i32
    return %arg0, %c0_i32, %c0_i32_0 : i32, i32, i32
  }
  func.func @transform_1(%arg0: i32) -> (i32, i32) {
    %c0_i32 = arith.constant 0 : i32
    %c0_i32_0 = arith.constant 0 : i32
    %c0_i32_1 = arith.constant 0 : i32
    return %c0_i32, %c0_i32_0 : i32, i32
  }
  func.func @transform_2(%arg0: i32) -> (i32, i32) {
    %c0_i32 = arith.constant 0 : i32
    %c0_i32_0 = arith.constant 0 : i32
    %c0_i32_1 = arith.constant 0 : i32
    return %c0_i32, %c0_i32_0 : i32, i32
  }
  func.func @transform_3(%arg0: i32) -> (i32, i32) {
    %c0_i32 = arith.constant 0 : i32
    %c0_i32_0 = arith.constant 0 : i32
    %c0_i32_1 = arith.constant 0 : i32
    return %c0_i32, %c0_i32_0 : i32, i32
  }
  func.func @transform_4(%arg0: i32) -> (i32, i32) {
    %c0_i32 = arith.constant 0 : i32
    %c0_i32_0 = arith.constant 0 : i32
    %c0_i32_1 = arith.constant 0 : i32
    return %c0_i32, %c0_i32_0 : i32, i32
  }
  func.func @transform_5(%arg0: i32) -> (i32, i32) {
    %c0_i32 = arith.constant 0 : i32
    %c0_i32_0 = arith.constant 0 : i32
    %c0_i32_1 = arith.constant 0 : i32
    return %c0_i32, %c0_i32_0 : i32, i32
  }
  func.func @transform_6(%arg0: i32) -> (i32, i32) {
    %c0_i32 = arith.constant 0 : i32
    %c0_i32_0 = arith.constant 0 : i32
    %c0_i32_1 = arith.constant 0 : i32
    return %c0_i32, %c0_i32_0 : i32, i32
  }
  func.func @transform_7(%arg0: i32) -> (i32, i32) {
    %c0_i32 = arith.constant 0 : i32
    %c0_i32_0 = arith.constant 0 : i32
    %c0_i32_1 = arith.constant 0 : i32
    return %c0_i32, %c0_i32_0 : i32, i32
  }
  func.func @transform_8(%arg0: i32) -> (i32, i32) {
    %c0_i32 = arith.constant 0 : i32
    %c0_i32_0 = arith.constant 0 : i32
    %c0_i32_1 = arith.constant 0 : i32
    return %c0_i32, %c0_i32_0 : i32, i32
  }
  func.func @transform_9(%arg0: i32) -> (i32, i32) {
    %c0_i32 = arith.constant 0 : i32
    %c0_i32_0 = arith.constant 0 : i32
    %c0_i32_1 = arith.constant 0 : i32
    return %c0_i32, %c0_i32_0 : i32, i32
  }
  func.func @transform_10(%arg0: i32) -> (i32, i32) {
    %c0_i32 = arith.constant 0 : i32
    %c0_i32_0 = arith.constant 0 : i32
    %c0_i32_1 = arith.constant 0 : i32
    return %c0_i32, %c0_i32_0 : i32, i32
  }
  func.func @transform_11(%arg0: i32) -> (i32, i32) {
    %c0_i32 = arith.constant 0 : i32
    %c0_i32_0 = arith.constant 0 : i32
    %c0_i32_1 = arith.constant 0 : i32
    return %c0_i32, %c0_i32_0 : i32, i32
  }
  func.func @transform_12(%arg0: i32) -> (i32, i32) {
    %c0_i32 = arith.constant 0 : i32
    %c0_i32_0 = arith.constant 0 : i32
    %c0_i32_1 = arith.constant 0 : i32
    return %c0_i32, %c0_i32_0 : i32, i32
  }
  func.func @transform_13(%arg0: i32) -> (i32, i32, i32) {
    %c0_i32 = arith.constant 0 : i32
    %c0_i32_0 = arith.constant 0 : i32
    %c0_i32_1 = arith.constant 0 : i32
    return %arg0, %c0_i32, %c0_i32_0 : i32, i32, i32
  }
}

</mosaic_0001>

<llo_original>
// kernel: tpu_custom_call.1
$region0: #{tpu_custom_call.1}
  #allocation0 [shape = 'u32[]', space=smem, size = 0x4, offset = 0x4, fixed_abs, tag = 'smem constant byte address 0x4 - core index']
  #allocation1 [shape = 'u32[144,128]{1,0:T(1,128)}', space=vmem, size = 0x12000, scoped, tag = 'internal scratch']
  #allocation2 [shape = 'bf16[16,32]{1,0:T(8,128)(2,1)}', space=vmem, size = 0x1000, scoped, tag = 'scratch operand']
  %s0 = inlined_call_operand.vmem [shape: f32[4,8,32], index: 0, kind: input, shape index: {}]
  %s1 = inlined_call_operand.vmem [shape: bf16[32,96], index: 1, kind: input, shape index: {}]
  %s2 = inlined_call_operand.vmem [shape: f32[1,96], index: 2, kind: input, shape index: {}]
  %s3 = inlined_call_operand.hbm [shape: bf16[32,32], index: 3, kind: input, shape index: {}]
  %s4 = inlined_call_operand.vmem [shape: f32[1,32], index: 4, kind: input, shape index: {}]
  %s5 = inlined_call_operand.hbm [shape: bf16[32,64], index: 5, kind: input, shape index: {}]
  %s6 = inlined_call_operand.vmem [shape: f32[1,64], index: 6, kind: input, shape index: {}]
  %s7 = inlined_call_operand.vmem [shape: bf16[64,32], index: 7, kind: input, shape index: {}]
  %s8 = inlined_call_operand.vmem [shape: f32[1,32], index: 8, kind: input, shape index: {}]
  %s9 = inlined_call_operand.vmem [shape: f32[1,32], index: 9, kind: input, shape index: {}]
  %s10 = inlined_call_operand.vmem [shape: f32[1,32], index: 10, kind: input, shape index: {}]
  %s11 = inlined_call_operand.vmem [shape: f32[1,32], index: 11, kind: input, shape index: {}]
  %s12 = inlined_call_operand.vmem [shape: f32[1,32], index: 12, kind: input, shape index: {}]
  %s13 = inlined_call_operand.hbm [shape: f32[4,8,32], index: 13, kind: output, shape index: {}]
  %s14 = sld [smem:[#allocation0]]
  $region93: #{tpu_custom_call.1} parent=0
    _
  %s16 = ssub.s32 1, %s14
  %s17 = scalar_select 0, %s16, %s14
  $region1: #{tpu_custom_call.1} parent=0
    #allocation3 [shape = 'u8[8192]{0}', space=vmem, size = 0x2000, scoped, tag = 'input window, operand 3, single buffered']
    #allocation4 [shape = 's32[2]{0}', space=sflag, size = 0x8, scoped, tag = 'scoped memory for tpu_custom_call.1']
    #allocation5 [shape = 's32[2]{0}', space=sflag, size = 0x8, scoped, tag = 'scoped memory for tpu_custom_call.1']
    #allocation6 [shape = 'u8[8192]{0}', space=vmem, size = 0x2000, scoped, tag = 'input window, operand 5, single buffered']
    #allocation7 [shape = 's32[1]{0}', space=sflag, size = 0x4, scoped, tag = 'scoped memory for tpu_custom_call.1']
    #allocation8 [shape = 'u8[16384]{0}', space=vmem, size = 0x4000, scoped, tag = 'output window, operand 0']
    %18 = vsyncpa [#allocation4], 0
    %19 = vsyncpa [#allocation7], 0
    %20 = vsyncpa [#allocation5], 0
    %s21 = scalar_lea.sflag [#allocation5], 1
    %22 = vsyncpa %s21, 0
    loop: start=0, step=1, limit=4
    $region2: #{tpu_custom_call.1} parent=1 // loop_pre_header
      _
    $region3: #{tpu_custom_call.1} parent=1 // loop_header
      %s24 = sphi 0, %s28
      %p25 = scmp.ge.s32.totalorder %s24, 4
      %s34 = sphi 0, %s36
      %s37 = sphi 0, %s34
      %s38 = sphi 0, %s37
      %s54 = sphi 0, %s38
      %s58 = sphi 0, %s58
      %s60 = sphi 0, %s58
      %s61 = sphi 0, %s60
      %s75 = sphi 0, %s61
      %s79 = sphi 0, %s79
      %s81 = sphi 0, %s79
      %s82 = sphi 0, %s81
      %s96 = sphi 0, %s82
      %s100 = sphi 0, %s100
      %s102 = sphi 0, %s100
      %s103 = sphi 0, %s102
      %s117 = sphi 0, %s103
      %s121 = sphi 0, %s121
      %s123 = sphi 0, %s121
      %s124 = sphi 0, %s123
      %s138 = sphi 0, %s124
      %s142 = sphi 0, %s142
      %s144 = sphi 0, %s142
      %s145 = sphi 0, %s144
      %s159 = sphi 0, %s145
      %s163 = sphi 0, %s163
      %s165 = sphi 0, %s163
      %s166 = sphi 0, %s165
      %s180 = sphi 0, %s166
      %s184 = sphi 0, %s184
      %s186 = sphi 0, %s184
      %s187 = sphi 0, %s186
      %s201 = sphi 0, %s187
      %s205 = sphi 0, %s205
      %s207 = sphi 0, %s205
      %s208 = sphi 0, %s207
      %s222 = sphi 0, %s208
      %s226 = sphi 0, %s226
      %s228 = sphi 0, %s226
      %s229 = sphi 0, %s228
      %s243 = sphi 0, %s229
      %s247 = sphi 0, %s247
      %s249 = sphi 0, %s247
      %s250 = sphi 0, %s249
      %s264 = sphi 0, %s250
      %s268 = sphi 0, %s268
      %s270 = sphi 0, %s268
      %s271 = sphi 0, %s270
      %s285 = sphi 0, %s271
      %s289 = sphi 0, %s289
      %s291 = sphi 0, %s289
      %s292 = sphi 0, %s291
      %s306 = sphi 0, %s292
      %s312 = sphi 0, %s314
      %s315 = sphi 0, %s312
      %s316 = sphi 0, %s315
      %s332 = sphi 0, %s316
    $region4: #{tpu_custom_call.1} parent=1 // loop_header_branch
      %27 = sbr.rel (%p25) target = $region8
    $region5: #{tpu_custom_call.1} parent=1 // loop_body
      %s29 = ssub.s32 %s24, 1
      %s30 = ssub.s32 %s24, 2
      %s31 = sadd.s32 %s24, 1
      %s32 = ssub.s32 %s24, %s31
      %p33 = scmp.eq.s32.totalorder %s32, 0
      %s35 = sadd.s32 %s34, 1
      %s36 = scalar_select %p33, %s34, %s35
      %p39 = pneg %p33
      %p40 = scmp.eq.s32.totalorder %s24, 1
      %p41 = por %p39, %p40
      %p42 = scmp.ne.s32.totalorder %s34, %s37
      %p43 = scmp.eq.s32.totalorder %s24, 0
      %p44 = por %p42, %p43
      %p45 = scmp.ne.s32.totalorder %s34, %s37
      %p46 = scmp.eq.s32.totalorder %s29, 1
      %p47 = por %p45, %p46
      %p48 = scmp.ne.s32.totalorder %s37, %s38
      %p49 = scmp.eq.s32.totalorder %s29, 0
      %p50 = por %p48, %p49
      %p51 = scmp.ne.s32.totalorder %s37, %s38
      %p52 = scmp.eq.s32.totalorder %s30, 1
      %p53 = por %p51, %p52
      %p55 = scmp.ne.s32.totalorder %s38, %s54
      %p56 = scmp.eq.s32.totalorder %s30, 0
      %p57 = por %p55, %p56
      %s59 = sadd.s32 %s58, 1
      %p62 = scmp.eq.s32.totalorder %s24, 1
      %p63 = scmp.ne.s32.totalorder %s58, %s60
      %p64 = scmp.eq.s32.totalorder %s24, 0
      %p65 = por %p63, %p64
      %p66 = scmp.ne.s32.totalorder %s58, %s60
      %p67 = scmp.eq.s32.totalorder %s29, 1
      %p68 = por %p66, %p67
      %p69 = scmp.ne.s32.totalorder %s60, %s61
      %p70 = scmp.eq.s32.totalorder %s29, 0
      %p71 = por %p69, %p70
      %p72 = scmp.ne.s32.totalorder %s60, %s61
      %p73 = scmp.eq.s32.totalorder %s30, 1
      %p74 = por %p72, %p73
      %p76 = scmp.ne.s32.totalorder %s61, %s75
      %p77 = scmp.eq.s32.totalorder %s30, 0
      %p78 = por %p76, %p77
      %s80 = sadd.s32 %s79, 1
      %p83 = scmp.eq.s32.totalorder %s24, 1
      %p84 = scmp.ne.s32.totalorder %s79, %s81
      %p85 = scmp.eq.s32.totalorder %s24, 0
      %p86 = por %p84, %p85
      %p87 = scmp.ne.s32.totalorder %s79, %s81
      %p88 = scmp.eq.s32.totalorder %s29, 1
      %p89 = por %p87, %p88
      %p90 = scmp.ne.s32.totalorder %s81, %s82
      %p91 = scmp.eq.s32.totalorder %s29, 0
      %p92 = por %p90, %p91
      %p93 = scmp.ne.s32.totalorder %s81, %s82
      %p94 = scmp.eq.s32.totalorder %s30, 1
      %p95 = por %p93, %p94
      %p97 = scmp.ne.s32.totalorder %s82, %s96
      %p98 = scmp.eq.s32.totalorder %s30, 0
      %p99 = por %p97, %p98
      %s101 = sadd.s32 %s100, 1
      %p104 = scmp.eq.s32.totalorder %s24, 1
      %p105 = scmp.ne.s32.totalorder %s100, %s102
      %p106 = scmp.eq.s32.totalorder %s24, 0
      %p107 = por %p105, %p106
      %p108 = scmp.ne.s32.totalorder %s100, %s102
      %p109 = scmp.eq.s32.totalorder %s29, 1
      %p110 = por %p108, %p109
      %p111 = scmp.ne.s32.totalorder %s102, %s103
      %p112 = scmp.eq.s32.totalorder %s29, 0
      %p113 = por %p111, %p112
      %p114 = scmp.ne.s32.totalorder %s102, %s103
      %p115 = scmp.eq.s32.totalorder %s30, 1
      %p116 = por %p114, %p115
      %p118 = scmp.ne.s32.totalorder %s103, %s117
      %p119 = scmp.eq.s32.totalorder %s30, 0
      %p120 = por %p118, %p119
      %s122 = sadd.s32 %s121, 1
      %p125 = scmp.eq.s32.totalorder %s24, 1
      %p126 = scmp.ne.s32.totalorder %s121, %s123
      %p127 = scmp.eq.s32.totalorder %s24, 0
      %p128 = por %p126, %p127
      %p129 = scmp.ne.s32.totalorder %s121, %s123
      %p130 = scmp.eq.s32.totalorder %s29, 1
      %p131 = por %p129, %p130
      %p132 = scmp.ne.s32.totalorder %s123, %s124
      %p133 = scmp.eq.s32.totalorder %s29, 0
      %p134 = por %p132, %p133
      %p135 = scmp.ne.s32.totalorder %s123, %s124
      %p136 = scmp.eq.s32.totalorder %s30, 1
      %p137 = por %p135, %p136
      %p139 = scmp.ne.s32.totalorder %s124, %s138
      %p140 = scmp.eq.s32.totalorder %s30, 0
      %p141 = por %p139, %p140
      %s143 = sadd.s32 %s142, 1
      %p146 = scmp.eq.s32.totalorder %s24, 1
      %p147 = scmp.ne.s32.totalorder %s142, %s144
      %p148 = scmp.eq.s32.totalorder %s24, 0
      %p149 = por %p147, %p148
      %p150 = scmp.ne.s32.totalorder %s142, %s144
      %p151 = scmp.eq.s32.totalorder %s29, 1
      %p152 = por %p150, %p151
      %p153 = scmp.ne.s32.totalorder %s144, %s145
      %p154 = scmp.eq.s32.totalorder %s29, 0
      %p155 = por %p153, %p154
      %p156 = scmp.ne.s32.totalorder %s144, %s145
      %p157 = scmp.eq.s32.totalorder %s30, 1
      %p158 = por %p156, %p157
      %p160 = scmp.ne.s32.totalorder %s145, %s159
      %p161 = scmp.eq.s32.totalorder %s30, 0
      %p162 = por %p160, %p161
      %s164 = sadd.s32 %s163, 1
      %p167 = scmp.eq.s32.totalorder %s24, 1
      %p168 = scmp.ne.s32.totalorder %s163, %s165
      %p169 = scmp.eq.s32.totalorder %s24, 0
      %p170 = por %p168, %p169
      %p171 = scmp.ne.s32.totalorder %s163, %s165
      %p172 = scmp.eq.s32.totalorder %s29, 1
      %p173 = por %p171, %p172
      %p174 = scmp.ne.s32.totalorder %s165, %s166
      %p175 = scmp.eq.s32.totalorder %s29, 0
      %p176 = por %p174, %p175
      %p177 = scmp.ne.s32.totalorder %s165, %s166
      %p178 = scmp.eq.s32.totalorder %s30, 1
      %p179 = por %p177, %p178
      %p181 = scmp.ne.s32.totalorder %s166, %s180
      %p182 = scmp.eq.s32.totalorder %s30, 0
      %p183 = por %p181, %p182
      %s185 = sadd.s32 %s184, 1
      %p188 = scmp.eq.s32.totalorder %s24, 1
      %p189 = scmp.ne.s32.totalorder %s184, %s186
      %p190 = scmp.eq.s32.totalorder %s24, 0
      %p191 = por %p189, %p190
      %p192 = scmp.ne.s32.totalorder %s184, %s186
      %p193 = scmp.eq.s32.totalorder %s29, 1
      %p194 = por %p192, %p193
      %p195 = scmp.ne.s32.totalorder %s186, %s187
      %p196 = scmp.eq.s32.totalorder %s29, 0
      %p197 = por %p195, %p196
      %p198 = scmp.ne.s32.totalorder %s186, %s187
      %p199 = scmp.eq.s32.totalorder %s30, 1
      %p200 = por %p198, %p199
      %p202 = scmp.ne.s32.totalorder %s187, %s201
      %p203 = scmp.eq.s32.totalorder %s30, 0
      %p204 = por %p202, %p203
      %s206 = sadd.s32 %s205, 1
      %p209 = scmp.eq.s32.totalorder %s24, 1
      %p210 = scmp.ne.s32.totalorder %s205, %s207
      %p211 = scmp.eq.s32.totalorder %s24, 0
      %p212 = por %p210, %p211
      %p213 = scmp.ne.s32.totalorder %s205, %s207
      %p214 = scmp.eq.s32.totalorder %s29, 1
      %p215 = por %p213, %p214
      %p216 = scmp.ne.s32.totalorder %s207, %s208
      %p217 = scmp.eq.s32.totalorder %s29, 0
      %p218 = por %p216, %p217
      %p219 = scmp.ne.s32.totalorder %s207, %s208
      %p220 = scmp.eq.s32.totalorder %s30, 1
      %p221 = por %p219, %p220
      %p223 = scmp.ne.s32.totalorder %s208, %s222
      %p224 = scmp.eq.s32.totalorder %s30, 0
      %p225 = por %p223, %p224
      %s227 = sadd.s32 %s226, 1
      %p230 = scmp.eq.s32.totalorder %s24, 1
      %p231 = scmp.ne.s32.totalorder %s226, %s228
      %p232 = scmp.eq.s32.totalorder %s24, 0
      %p233 = por %p231, %p232
      %p234 = scmp.ne.s32.totalorder %s226, %s228
      %p235 = scmp.eq.s32.totalorder %s29, 1
      %p236 = por %p234, %p235
      %p237 = scmp.ne.s32.totalorder %s228, %s229
      %p238 = scmp.eq.s32.totalorder %s29, 0
      %p239 = por %p237, %p238
      %p240 = scmp.ne.s32.totalorder %s228, %s229
      %p241 = scmp.eq.s32.totalorder %s30, 1
      %p242 = por %p240, %p241
      %p244 = scmp.ne.s32.totalorder %s229, %s243
      %p245 = scmp.eq.s32.totalorder %s30, 0
      %p246 = por %p244, %p245
      %s248 = sadd.s32 %s247, 1
      %p251 = scmp.eq.s32.totalorder %s24, 1
      %p252 = scmp.ne.s32.totalorder %s247, %s249
      %p253 = scmp.eq.s32.totalorder %s24, 0
      %p254 = por %p252, %p253
      %p255 = scmp.ne.s32.totalorder %s247, %s249
      %p256 = scmp.eq.s32.totalorder %s29, 1
      %p257 = por %p255, %p256
      %p258 = scmp.ne.s32.totalorder %s249, %s250
      %p259 = scmp.eq.s32.totalorder %s29, 0
      %p260 = por %p258, %p259
      %p261 = scmp.ne.s32.totalorder %s249, %s250
      %p262 = scmp.eq.s32.totalorder %s30, 1
      %p263 = por %p261, %p262
      %p265 = scmp.ne.s32.totalorder %s250, %s264
      %p266 = scmp.eq.s32.totalorder %s30, 0
      %p267 = por %p265, %p266
      %s269 = sadd.s32 %s268, 1
      %p272 = scmp.eq.s32.totalorder %s24, 1
      %p273 = scmp.ne.s32.totalorder %s268, %s270
      %p274 = scmp.eq.s32.totalorder %s24, 0
      %p275 = por %p273, %p274
      %p276 = scmp.ne.s32.totalorder %s268, %s270
      %p277 = scmp.eq.s32.totalorder %s29, 1
      %p278 = por %p276, %p277
      %p279 = scmp.ne.s32.totalorder %s270, %s271
      %p280 = scmp.eq.s32.totalorder %s29, 0
      %p281 = por %p279, %p280
      %p282 = scmp.ne.s32.totalorder %s270, %s271
      %p283 = scmp.eq.s32.totalorder %s30, 1
      %p284 = por %p282, %p283
      %p286 = scmp.ne.s32.totalorder %s271, %s285
      %p287 = scmp.eq.s32.totalorder %s30, 0
      %p288 = por %p286, %p287
      %s290 = sadd.s32 %s289, 1
      %p293 = scmp.eq.s32.totalorder %s24, 1
      %p294 = scmp.ne.s32.totalorder %s289, %s291
      %p295 = scmp.eq.s32.totalorder %s24, 0
      %p296 = por %p294, %p295
      %p297 = scmp.ne.s32.totalorder %s289, %s291
      %p298 = scmp.eq.s32.totalorder %s29, 1
      %p299 = por %p297, %p298
      %p300 = scmp.ne.s32.totalorder %s291, %s292
      %p301 = scmp.eq.s32.totalorder %s29, 0
      %p302 = por %p300, %p301
      %p303 = scmp.ne.s32.totalorder %s291, %s292
      %p304 = scmp.eq.s32.totalorder %s30, 1
      %p305 = por %p303, %p304
      %p307 = scmp.ne.s32.totalorder %s292, %s306
      %p308 = scmp.eq.s32.totalorder %s30, 0
      %p309 = por %p307, %p308
      %s310 = ssub.s32 %s24, %s31
      %p311 = scmp.eq.s32.totalorder %s310, 0
      %s313 = sadd.s32 %s312, 1
      %s314 = scalar_select %p311, %s312, %s313
      %p317 = pneg %p311
      %p318 = scmp.eq.s32.totalorder %s24, 1
      %p319 = por %p317, %p318
      %p320 = scmp.ne.s32.totalorder %s312, %s315
      %p321 = scmp.eq.s32.totalorder %s24, 0
      %p322 = por %p320, %p321
      %p323 = scmp.ne.s32.totalorder %s312, %s315
      %p324 = scmp.eq.s32.totalorder %s29, 1
      %p325 = por %p323, %p324
      %p326 = scmp.ne.s32.totalorder %s315, %s316
      %p327 = scmp.eq.s32.totalorder %s29, 0
      %p328 = por %p326, %p327
      %p329 = scmp.ne.s32.totalorder %s315, %s316
      %p330 = scmp.eq.s32.totalorder %s30, 1
      %p331 = por %p329, %p330
      %p333 = scmp.ne.s32.totalorder %s316, %s332
      %p334 = scmp.eq.s32.totalorder %s30, 0
      %p335 = por %p333, %p334
      %p336 = scmp.le.s32.totalorder 1, %s24
      %p337 = scmp.lt.s32.totalorder %s24, 3
      %p338 = pnand %p336, %p337
      %p339 = pneg %p338
      // Predicated region
      $region9: #{tpu_custom_call.1} parent=5 // pred_check
        _
      $region10: #{tpu_custom_call.1} parent=5 // pred_check_branch
        %341 = sbr.rel (%p338) target = $region12
      $region11: #{tpu_custom_call.1} parent=5 // pred_region
        %s342 = ssub.s32 %s24, 1
        // Predicated region
        $region13: #{tpu_custom_call.1} parent=11 // pred_check
          %p343 = pneg %p71
        $region14: #{tpu_custom_call.1} parent=11 // pred_check_branch
          %345 = sbr.rel (%p343) target = $region16
        $region15: #{tpu_custom_call.1} parent=11 // pred_region
          _
        $region16: #{tpu_custom_call.1} parent=11 // pred_fallthru
          _
        // Predicated region
        $region17: #{tpu_custom_call.1} parent=11 // pred_check
          %p346 = pneg %p92
        $region18: #{tpu_custom_call.1} parent=11 // pred_check_branch
          %348 = sbr.rel (%p346) target = $region20
        $region19: #{tpu_custom_call.1} parent=11 // pred_region
          _
        $region20: #{tpu_custom_call.1} parent=11 // pred_fallthru
          _
        // Predicated region
        $region21: #{tpu_custom_call.1} parent=11 // pred_check
          %p349 = pneg %p113
        $region22: #{tpu_custom_call.1} parent=11 // pred_check_branch
          %351 = sbr.rel (%p349) target = $region24
        $region23: #{tpu_custom_call.1} parent=11 // pred_region
          %s353 = ssub.s32 256, 256
          %354 = vsyncadd [#allocation4], %s353
          %s355 = sshll.u32 [#allocation3], 4
          %s356 = int_to_ptr.vmem [resolvable:$true] %s355
          %361 = dma.hbm_to_vmem [thread:$0]  %s3, 256, %s356, [#allocation4], 64, 64, 4
        $region24: #{tpu_custom_call.1} parent=11 // pred_fallthru
          _
        // Predicated region
        $region25: #{tpu_custom_call.1} parent=11 // pred_check
          %p362 = pneg %p134
        $region26: #{tpu_custom_call.1} parent=11 // pred_check_branch
          %364 = sbr.rel (%p362) target = $region28
        $region27: #{tpu_custom_call.1} parent=11 // pred_region
          _
        $region28: #{tpu_custom_call.1} parent=11 // pred_fallthru
          _
        // Predicated region
        $region29: #{tpu_custom_call.1} parent=11 // pred_check
          %p365 = pneg %p155
        $region30: #{tpu_custom_call.1} parent=11 // pred_check_branch
          %367 = sbr.rel (%p365) target = $region32
        $region31: #{tpu_custom_call.1} parent=11 // pred_region
          %s369 = ssub.s32 256, 256
          %370 = vsyncadd [#allocation7], %s369
          %s371 = sshll.u32 [#allocation6], 4
          %s372 = int_to_ptr.vmem [resolvable:$true] %s371
          %377 = dma.hbm_to_vmem [thread:$0]  %s5, 256, %s372, [#allocation7], 64, 64, 4
        $region32: #{tpu_custom_call.1} parent=11 // pred_fallthru
          _
        // Predicated region
        $region33: #{tpu_custom_call.1} parent=11 // pred_check
          %p378 = pneg %p176
        $region34: #{tpu_custom_call.1} parent=11 // pred_check_branch
          %380 = sbr.rel (%p378) target = $region36
        $region35: #{tpu_custom_call.1} parent=11 // pred_region
          _
        $region36: #{tpu_custom_call.1} parent=11 // pred_fallthru
          _
        // Predicated region
        $region37: #{tpu_custom_call.1} parent=11 // pred_check
          %p381 = pneg %p197
        $region38: #{tpu_custom_call.1} parent=11 // pred_check_branch
          %383 = sbr.rel (%p381) target = $region40
        $region39: #{tpu_custom_call.1} parent=11 // pred_region
          _
        $region40: #{tpu_custom_call.1} parent=11 // pred_fallthru
          _
        // Predicated region
        $region41: #{tpu_custom_call.1} parent=11 // pred_check
          %p384 = pneg %p218
        $region42: #{tpu_custom_call.1} parent=11 // pred_check_branch
          %386 = sbr.rel (%p384) target = $region44
        $region43: #{tpu_custom_call.1} parent=11 // pred_region
          _
        $region44: #{tpu_custom_call.1} parent=11 // pred_fallthru
          _
        // Predicated region
        $region45: #{tpu_custom_call.1} parent=11 // pred_check
          %p387 = pneg %p239
        $region46: #{tpu_custom_call.1} parent=11 // pred_check_branch
          %389 = sbr.rel (%p387) target = $region48
        $region47: #{tpu_custom_call.1} parent=11 // pred_region
          _
        $region48: #{tpu_custom_call.1} parent=11 // pred_fallthru
          _
        // Predicated region
        $region49: #{tpu_custom_call.1} parent=11 // pred_check
          %p390 = pneg %p260
        $region50: #{tpu_custom_call.1} parent=11 // pred_check_branch
          %392 = sbr.rel (%p390) target = $region52
        $region51: #{tpu_custom_call.1} parent=11 // pred_region
          _
        $region52: #{tpu_custom_call.1} parent=11 // pred_fallthru
          _
        // Predicated region
        $region53: #{tpu_custom_call.1} parent=11 // pred_check
          %p393 = pneg %p281
        $region54: #{tpu_custom_call.1} parent=11 // pred_check_branch
          %395 = sbr.rel (%p393) target = $region56
        $region55: #{tpu_custom_call.1} parent=11 // pred_region
          _
        $region56: #{tpu_custom_call.1} parent=11 // pred_fallthru
          _
        // Predicated region
        $region57: #{tpu_custom_call.1} parent=11 // pred_check
          %p396 = pneg %p302
        $region58: #{tpu_custom_call.1} parent=11 // pred_check_branch
          %398 = sbr.rel (%p396) target = $region60
        $region59: #{tpu_custom_call.1} parent=11 // pred_region
          _
        $region60: #{tpu_custom_call.1} parent=11 // pred_fallthru
          _
      $region12: #{tpu_custom_call.1} parent=5 // pred_fallthru
        _
      %p399 = scmp.lt.s32.totalorder %s24, 2
      // Predicated region
      $region61: #{tpu_custom_call.1} parent=5 // pred_check
        %p400 = pneg %p399
      $region62: #{tpu_custom_call.1} parent=5 // pred_check_branch
        %402 = sbr.rel (%p400) target = $region64
      $region63: #{tpu_custom_call.1} parent=5 // pred_region
        // Predicated region
        $region65: #{tpu_custom_call.1} parent=63 // pred_check
          %p403 = pneg %p44
        $region66: #{tpu_custom_call.1} parent=63 // pred_check_branch
          %405 = sbr.rel (%p403) target = $region68
        $region67: #{tpu_custom_call.1} parent=63 // pred_region
          %s406 = smul.u32 2, %s24
          %p407 = scmp.lt.s32.totalorder %s406, 3
          %s408 = scalar_select %p407, %s406, 3
          %s409 = smul.addr %s408, 8
          %s410 = scalar_lea.vmem %s0, %s409
          %s411 = smul.u32 2, %s24
        $region68: #{tpu_custom_call.1} parent=63 // pred_fallthru
          _
      $region64: #{tpu_custom_call.1} parent=5 // pred_fallthru
        _
      %p412 = scmp.le.s32.totalorder 1, %s24
      %p413 = scmp.lt.s32.totalorder %s24, 3
      %p414 = pnand %p412, %p413
      %p415 = pneg %p414
      // Predicated region
      $region69: #{tpu_custom_call.1} parent=5 // pred_check
        _
      $region70: #{tpu_custom_call.1} parent=5 // pred_check_branch
        %417 = sbr.rel (%p414) target = $region72
      $region71: #{tpu_custom_call.1} parent=5 // pred_region
        %s418 = ssub.s32 %s24, 1
        // Predicated region
        $region73: #{tpu_custom_call.1} parent=71 // pred_check
          %p419 = pneg %p113
        $region74: #{tpu_custom_call.1} parent=71 // pred_check_branch
          %421 = sbr.rel (%p419) target = $region76
        $region75: #{tpu_custom_call.1} parent=71 // pred_region
          %422 = dma.done [#allocation4], 256
        $region76: #{tpu_custom_call.1} parent=71 // pred_fallthru
          _
        // Predicated region
        $region77: #{tpu_custom_call.1} parent=71 // pred_check
          %p423 = pneg %p155
        $region78: #{tpu_custom_call.1} parent=71 // pred_check_branch
          %425 = sbr.rel (%p423) target = $region80
        $region79: #{tpu_custom_call.1} parent=71 // pred_region
          %426 = dma.done [#allocation7], 256
        $region80: #{tpu_custom_call.1} parent=71 // pred_fallthru
          _
        %s427 = smul.u32 2, %s29
        %p428 = scmp.lt.s32.totalorder %s427, 3
        %s429 = scalar_select %p428, %s427, 3
        %s430 = smul.addr %s429, 8
        %s431 = scalar_lea.vmem %s0, %s430
        %p432 = pneg %p50
        %p433 = pneg %p47
        %p434 = pneg %p71
        %p435 = pneg %p68
        %p436 = pneg %p92
        %p437 = pneg %p89
        %p438 = pneg %p113
        %p439 = pneg %p110
        %p440 = pneg %p134
        %p441 = pneg %p131
        %p442 = pneg %p155
        %p443 = pneg %p152
        %p444 = pneg %p176
        %p445 = pneg %p173
        %p446 = pneg %p197
        %p447 = pneg %p194
        %p448 = pneg %p218
        %p449 = pneg %p215
        %p450 = pneg %p239
        %p451 = pneg %p236
        %p452 = pneg %p260
        %p453 = pneg %p257
        %p454 = pneg %p281
        %p455 = pneg %p278
        %p456 = pneg %p302
        %p457 = pneg %p299
        %p458 = pneg %p328
        %p459 = pneg %p325
        %s460 = sand.u32 %s315, 1
        %s461 = scalar_lea.sflag [#allocation5], %s460
        %s462 = sand.u32 %s315, 1
        %s463 = smul.addr %s462, 16
        %s464 = scalar_lea.vmem [#allocation8], %s463
        %s465 = smul.u32 2, %s29
        %p466 = scmp.lt.s32.totalorder %s465, 3
        %s467 = scalar_select %p466, %s465, 3
        %s468 = smul.addr %s467, 8
        %s469 = scalar_lea.vmem %s0, %s468
        %s470 = smul.u32 2, %s29
        %s471 = smul.u32 2, %s29
        %v473 = vld [vmem:[%s469] sm:$0xff]
        %v474 = vld [vmem:[%s469 + $0x8] sm:$0xff]
        %v475 = vpack.c.bf16 %v474, %v473
        %v476 = vld [vmem:[%s1] sm:$0xf]
        %v477 = vld [vmem:[%s1 + $0x4] sm:$0xf]
        %v478 = vld [vmem:[%s1 + $0x8] sm:$0xf]
        %v479 = vld [vmem:[%s1 + $0xc] sm:$0xf]
        %v480 = vld [vmem:[%s2] sm:$0x1]
        %v482 = vlaneseq
        %v483 = vshrl.u32 %v482, 7
        %v484 = vsub.s32 0, %v483
        %v485 = vrot.slane %v480, %v484
        %v491 = vunpack.c.l.b16 %v476
        %v492 = vunpack.c.l.b16 %v477
        %v493 = vunpack.c.l.b16 %v478
        %v494 = vunpack.c.l.b16 %v479
        %v495 = vpack.c.b16 %v492, %v491
        %v496 = vpack.c.b16 %v494, %v493
        %vm499 = vcmask 261120
        %v501 = vsel %vm499, %v475, 0
        %503 = vmatprep.subr.bf16.mxu0 0
        %504 = vmatpush1.bf16.msra.mxu0 0
        %505 = vmatprep.subr.bf16.mxu0 0
        %506 = vmatpush1.bf16.msra.mxu0 0
        %507 = vmatprep.subr.bf16.mxu0 0
        %508 = vmatpush1.bf16.msra.mxu0 0
        %509 = vmatprep.subr.bf16.mxu0 0
        %510 = vmatpush1.bf16.msra.mxu0 0
        %511 = vmatprep.subr.bf16.mxu0 0
        %512 = vmatpush1.bf16.msra.mxu0 0
        %513 = vmatprep.subr.bf16.mxu0 0
        %514 = vmatpush1.bf16.msra.mxu0 0
        %515 = vmatprep.subr.bf16.mxu0 0
        %516 = vmatpush1.bf16.msra.mxu0 %v496
        %517 = vmatprep.subr.bf16.mxu0 0
        %518 = vmatpush1.bf16.msra.mxu0 %v495
        %519 = vmatprep.subr.bf16.mxu0 0
        %520 = vmatpush2.bf16.msra.mxu0 0
        %521 = vmatprep.subr.bf16.mxu0 0
        %522 = vmatpush2.bf16.msra.mxu0 0
        %523 = vmatprep.subr.bf16.mxu0 0
        %524 = vmatpush2.bf16.msra.mxu0 0
        %525 = vmatprep.subr.bf16.mxu0 0
        %526 = vmatpush2.bf16.msra.mxu0 0
        %527 = vmatprep.subr.bf16.mxu0 0
        %528 = vmatpush2.bf16.msra.mxu0 0
        %529 = vmatprep.subr.bf16.mxu0 0
        %530 = vmatpush2.bf16.msra.mxu0 0
        %531 = vmatprep.subr.bf16.mxu0 0
        %532 = vmatpush2.bf16.msra.mxu0 0
        %533 = vmatprep.subr.bf16.mxu0 0
        %534 = vmatpush2.bf16.msra.mxu0 0
        %535 = vmatprep.mubr.bf16.mxu0 0
        %536 = vmatmul.mubr.bf16.gmra.mxu0 %v501
        %v537 = vpop.f32.mrf.mxu0
        %v538 = vadd.f32 %v485, %v537
        %v539 = vpop.f32.mrf.mxu0
        %v540 = vpop.f32.mrf.mxu0
        %v541 = vadd.f32 %v485, %v540
        %v542 = vpop.f32.mrf.mxu0
        %543 = vdwg.mxu0
        %v544 = vpack.c.bf16 %v538, %v538
        %v545 = vpack.c.bf16 %v541, %v541
        %547 = vrot.lane.b32.xlu0 %v544, 96
        %v548 = vpop.permute.xlu0 %547
        %vm549 = vcmask 64512
        %v551 = vsel %vm549, %v544, 0
        %v554 = vsel %vm549, %v548, 0
        %556 = vmatprep.subr.bf16.mxu0 0
        %557 = vmatpush1.bf16.xpose.msra.mxu0 0
        %558 = vmatprep.subr.bf16.mxu0 0
        %559 = vmatpush1.bf16.xpose.msra.mxu0 0
        %560 = vmatprep.subr.bf16.mxu0 0
        %561 = vmatpush1.bf16.xpose.msra.mxu0 0
        %562 = vmatprep.subr.bf16.mxu0 0
        %563 = vmatpush1.bf16.xpose.msra.mxu0 0
        %564 = vmatprep.subr.bf16.mxu0 0
        %565 = vmatpush1.bf16.xpose.msra.mxu0 0
        %566 = vmatprep.subr.bf16.mxu0 0
        %567 = vmatpush1.bf16.xpose.msra.mxu0 0
        %568 = vmatprep.subr.bf16.mxu0 0
        %569 = vmatpush1.bf16.xpose.msra.mxu0 0
        %570 = vmatprep.subr.bf16.mxu0 0
        %571 = vmatpush1.bf16.xpose.msra.mxu0 %v554
        %572 = vmatprep.subr.bf16.mxu0 0
        %573 = vmatpush2.bf16.xpose.msra.mxu0 0
        %574 = vmatprep.subr.bf16.mxu0 0
        %575 = vmatpush2.bf16.xpose.msra.mxu0 0
        %576 = vmatprep.subr.bf16.mxu0 0
        %577 = vmatpush2.bf16.xpose.msra.mxu0 0
        %578 = vmatprep.subr.bf16.mxu0 0
        %579 = vmatpush2.bf16.xpose.msra.mxu0 0
        %580 = vmatprep.subr.bf16.mxu0 0
        %581 = vmatpush2.bf16.xpose.msra.mxu0 0
        %582 = vmatprep.subr.bf16.mxu0 0
        %583 = vmatpush2.bf16.xpose.msra.mxu0 0
        %584 = vmatprep.subr.bf16.mxu0 0
        %585 = vmatpush2.bf16.xpose.msra.mxu0 0
        %586 = vmatprep.subr.bf16.mxu0 0
        %587 = vmatpush2.bf16.xpose.msra.mxu0 0
        %588 = vmatprep.mubr.bf16.mxu0 0
        %589 = vmatmul.mubr.bf16.gmra.mxu0 %v551
        %v590 = vpop.f32.mrf.mxu0
        %v591 = vadd.f32 0.0, %v590
        %v592 = vpop.f32.mrf.mxu0
        %v593 = vpop.f32.mrf.mxu0
        %v594 = vpop.f32.mrf.mxu0
        %595 = vdwg.mxu0
        %597 = vrot.lane.b32.xlu0 %v545, 96
        %v598 = vpop.permute.xlu0 %597
        %v600 = vsel %vm549, %v545, 0
        %v603 = vsel %vm549, %v598, 0
        %605 = vmatprep.subr.bf16.mxu0 0
        %606 = vmatpush1.bf16.xpose.msra.mxu0 0
        %607 = vmatprep.subr.bf16.mxu0 0
        %608 = vmatpush1.bf16.xpose.msra.mxu0 0
        %609 = vmatprep.subr.bf16.mxu0 0
        %610 = vmatpush1.bf16.xpose.msra.mxu0 0
        %611 = vmatprep.subr.bf16.mxu0 0
        %612 = vmatpush1.bf16.xpose.msra.mxu0 0
        %613 = vmatprep.subr.bf16.mxu0 0
        %614 = vmatpush1.bf16.xpose.msra.mxu0 0
        %615 = vmatprep.subr.bf16.mxu0 0
        %616 = vmatpush1.bf16.xpose.msra.mxu0 0
        %617 = vmatprep.subr.bf16.mxu0 0
        %618 = vmatpush1.bf16.xpose.msra.mxu0 0
        %619 = vmatprep.subr.bf16.mxu0 0
        %620 = vmatpush1.bf16.xpose.msra.mxu0 %v603
        %621 = vmatprep.subr.bf16.mxu0 0
        %622 = vmatpush2.bf16.xpose.msra.mxu0 0
        %623 = vmatprep.subr.bf16.mxu0 0
        %624 = vmatpush2.bf16.xpose.msra.mxu0 0
        %625 = vmatprep.subr.bf16.mxu0 0
        %626 = vmatpush2.bf16.xpose.msra.mxu0 0
        %627 = vmatprep.subr.bf16.mxu0 0
        %628 = vmatpush2.bf16.xpose.msra.mxu0 0
        %629 = vmatprep.subr.bf16.mxu0 0
        %630 = vmatpush2.bf16.xpose.msra.mxu0 0
        %631 = vmatprep.subr.bf16.mxu0 0
        %632 = vmatpush2.bf16.xpose.msra.mxu0 0
        %633 = vmatprep.subr.bf16.mxu0 0
        %634 = vmatpush2.bf16.xpose.msra.mxu0 0
        %635 = vmatprep.subr.bf16.mxu0 0
        %636 = vmatpush2.bf16.xpose.msra.mxu0 0
        %637 = vmatprep.mubr.bf16.mxu0 0
        %638 = vmatmul.mubr.bf16.gmra.mxu0 %v600
        %v639 = vpop.f32.mrf.mxu0
        %v640 = vadd.f32 0.0, %v639
        %v641 = vpop.f32.mrf.mxu0
        %v642 = vpop.f32.mrf.mxu0
        %v643 = vpop.f32.mrf.mxu0
        %644 = vdwg.mxu0
        %v645 = vsel %vm549, %v591, -inf
        %646 = vmax.xlane.f32.xlu0 %v645
        %v647 = vpop.xlane.xlu0 %646
        %v648 = vsel %vm549, %v640, -inf
        %649 = vmax.xlane.f32.xlu0 %v648
        %v650 = vpop.xlane.xlu0 %649
        %v651 = vsub.f32 %v591, %v647
        %v652 = vsub.f32 %v640, %v650
        %v653 = vmul.f32 %v651, 1.442695
        %v654 = vpow.pop %v653
        %v655 = vmul.f32 %v652, 1.442695
        %v656 = vpow.pop %v655
        %v657 = vpack.c.bf16 %v654, %v654
        %v658 = vpack.c.bf16 %v656, %v656
        %v659 = vunpack.c.l.bf16 %v657
        %v660 = vunpack.c.l.bf16 %v658
        %v661 = vsel %vm549, %v659, 0.0
        %662 = vadd.xlane.f32.xlu0 %v661
        %v663 = vpop.xlane.xlu0 %662
        %v664 = vsel %vm549, %v660, 0.0
        %665 = vadd.xlane.f32.xlu0 %v664
        %v666 = vpop.xlane.xlu0 %665
        %667 = vrot.lane.b32.xlu0 %v544, 64
        %v668 = vpop.permute.xlu0 %667
        %v670 = vsel %vm549, %v657, 0
        %vm672 = vcmask 1043456
        %v674 = vsel %vm672, %v668, 0
        %676 = vmatprep.subr.bf16.mxu0 0
        %677 = vmatpush1.bf16.msra.mxu0 0
        %678 = vmatprep.subr.bf16.mxu0 0
        %679 = vmatpush1.bf16.msra.mxu0 0
        %680 = vmatprep.subr.bf16.mxu0 0
        %681 = vmatpush1.bf16.msra.mxu0 0
        %682 = vmatprep.subr.bf16.mxu0 0
        %683 = vmatpush1.bf16.msra.mxu0 0
        %684 = vmatprep.subr.bf16.mxu0 0
        %685 = vmatpush1.bf16.msra.mxu0 0
        %686 = vmatprep.subr.bf16.mxu0 0
        %687 = vmatpush1.bf16.msra.mxu0 0
        %688 = vmatprep.subr.bf16.mxu0 0
        %689 = vmatpush1.bf16.msra.mxu0 0
        %690 = vmatprep.subr.bf16.mxu0 0
        %691 = vmatpush1.bf16.msra.mxu0 %v674
        %692 = vmatprep.subr.bf16.mxu0 0
        %693 = vmatpush2.bf16.msra.mxu0 0
        %694 = vmatprep.subr.bf16.mxu0 0
        %695 = vmatpush2.bf16.msra.mxu0 0
        %696 = vmatprep.subr.bf16.mxu0 0
        %697 = vmatpush2.bf16.msra.mxu0 0
        %698 = vmatprep.subr.bf16.mxu0 0
        %699 = vmatpush2.bf16.msra.mxu0 0
        %700 = vmatprep.subr.bf16.mxu0 0
        %701 = vmatpush2.bf16.msra.mxu0 0
        %702 = vmatprep.subr.bf16.mxu0 0
        %703 = vmatpush2.bf16.msra.mxu0 0
        %704 = vmatprep.subr.bf16.mxu0 0
        %705 = vmatpush2.bf16.msra.mxu0 0
        %706 = vmatprep.subr.bf16.mxu0 0
        %707 = vmatpush2.bf16.msra.mxu0 0
        %708 = vmatprep.mubr.bf16.mxu0 0
        %709 = vmatmul.mubr.bf16.gmra.mxu0 %v670
        %v710 = vpop.f32.mrf.mxu0
        %v711 = vadd.f32 0.0, %v710
        %v712 = vpop.f32.mrf.mxu0
        %v713 = vpop.f32.mrf.mxu0
        %v714 = vpop.f32.mrf.mxu0
        %715 = vdwg.mxu0
        %716 = vrot.lane.b32.xlu0 %v545, 64
        %v717 = vpop.permute.xlu0 %716
        %v719 = vsel %vm549, %v658, 0
        %v722 = vsel %vm672, %v717, 0
        %724 = vmatprep.subr.bf16.mxu0 0
        %725 = vmatpush1.bf16.msra.mxu0 0
        %726 = vmatprep.subr.bf16.mxu0 0
        %727 = vmatpush1.bf16.msra.mxu0 0
        %728 = vmatprep.subr.bf16.mxu0 0
        %729 = vmatpush1.bf16.msra.mxu0 0
        %730 = vmatprep.subr.bf16.mxu0 0
        %731 = vmatpush1.bf16.msra.mxu0 0
        %732 = vmatprep.subr.bf16.mxu0 0
        %733 = vmatpush1.bf16.msra.mxu0 0
        %734 = vmatprep.subr.bf16.mxu0 0
        %735 = vmatpush1.bf16.msra.mxu0 0
        %736 = vmatprep.subr.bf16.mxu0 0
        %737 = vmatpush1.bf16.msra.mxu0 0
        %738 = vmatprep.subr.bf16.mxu0 0
        %739 = vmatpush1.bf16.msra.mxu0 %v722
        %740 = vmatprep.subr.bf16.mxu0 0
        %741 = vmatpush2.bf16.msra.mxu0 0
        %742 = vmatprep.subr.bf16.mxu0 0
        %743 = vmatpush2.bf16.msra.mxu0 0
        %744 = vmatprep.subr.bf16.mxu0 0
        %745 = vmatpush2.bf16.msra.mxu0 0
        %746 = vmatprep.subr.bf16.mxu0 0
        %747 = vmatpush2.bf16.msra.mxu0 0
        %748 = vmatprep.subr.bf16.mxu0 0
        %749 = vmatpush2.bf16.msra.mxu0 0
        %750 = vmatprep.subr.bf16.mxu0 0
        %751 = vmatpush2.bf16.msra.mxu0 0
        %752 = vmatprep.subr.bf16.mxu0 0
        %753 = vmatpush2.bf16.msra.mxu0 0
        %754 = vmatprep.subr.bf16.mxu0 0
        %755 = vmatpush2.bf16.msra.mxu0 0
        %756 = vmatprep.mubr.bf16.mxu0 0
        %757 = vmatmul.mubr.bf16.gmra.mxu0 %v719
        %v758 = vpop.f32.mrf.mxu0
        %v759 = vadd.f32 0.0, %v758
        %v760 = vpop.f32.mrf.mxu0
        %v761 = vpop.f32.mrf.mxu0
        %v762 = vpop.f32.mrf.mxu0
        %763 = vdwg.mxu0
        %v764 = vrcp.pop %v663
        %v765 = vrcp.pop %v666
        %v766 = vmul.f32 %v711, %v764
        %v767 = vmul.f32 %v759, %v765
        %v768 = vpack.c.bf16 %v767, %v766
        %v770 = vunpack.c.l.b16 %v768
        %v771 = vunpack.c.h.b16 %v768
        %v772 = vpack.c.b16 %v770, %v770
        %v773 = vpack.c.b16 %v771, %v771
        %vm776 = vcmask 60416
        %777 = vst.msk [vmem:[#allocation2] sm:$0xf] %vm776, %v772
        %778 = vst.msk [vmem:[#allocation2 + $0x4] sm:$0xf] %vm776, %v773
        %779 = vrot.lane.b32.xlu0 %v544, 120
        %v780 = vpop.permute.xlu0 %779
        %781 = vrot.lane.b32.xlu0 %v544, 88
        %v782 = vpop.permute.xlu0 %781
        %v784 = vsel %vm549, %v780, 0
        %v787 = vsel %vm549, %v782, 0
        %789 = vmatprep.subr.bf16.mxu0 0
        %790 = vmatpush1.bf16.xpose.msra.mxu0 0
        %791 = vmatprep.subr.bf16.mxu0 0
        %792 = vmatpush1.bf16.xpose.msra.mxu0 0
        %793 = vmatprep.subr.bf16.mxu0 0
        %794 = vmatpush1.bf16.xpose.msra.mxu0 0
        %795 = vmatprep.subr.bf16.mxu0 0
        %796 = vmatpush1.bf16.xpose.msra.mxu0 0
        %797 = vmatprep.subr.bf16.mxu0 0
        %798 = vmatpush1.bf16.xpose.msra.mxu0 0
        %799 = vmatprep.subr.bf16.mxu0 0
        %800 = vmatpush1.bf16.xpose.msra.mxu0 0
        %801 = vmatprep.subr.bf16.mxu0 0
        %802 = vmatpush1.bf16.xpose.msra.mxu0 0
        %803 = vmatprep.subr.bf16.mxu0 0
        %804 = vmatpush1.bf16.xpose.msra.mxu0 %v787
        %805 = vmatprep.subr.bf16.mxu0 0
        %806 = vmatpush2.bf16.xpose.msra.mxu0 0
        %807 = vmatprep.subr.bf16.mxu0 0
        %808 = vmatpush2.bf16.xpose.msra.mxu0 0
        %809 = vmatprep.subr.bf16.mxu0 0
        %810 = vmatpush2.bf16.xpose.msra.mxu0 0
        %811 = vmatprep.subr.bf16.mxu0 0
        %812 = vmatpush2.bf16.xpose.msra.mxu0 0
        %813 = vmatprep.subr.bf16.mxu0 0
        %814 = vmatpush2.bf16.xpose.msra.mxu0 0
        %815 = vmatprep.subr.bf16.mxu0 0
        %816 = vmatpush2.bf16.xpose.msra.mxu0 0
        %817 = vmatprep.subr.bf16.mxu0 0
        %818 = vmatpush2.bf16.xpose.msra.mxu0 0
        %819 = vmatprep.subr.bf16.mxu0 0
        %820 = vmatpush2.bf16.xpose.msra.mxu0 0
        %821 = vmatprep.mubr.bf16.mxu0 0
        %822 = vmatmul.mubr.bf16.gmra.mxu0 %v784
        %v823 = vpop.f32.mrf.mxu0
        %v824 = vadd.f32 0.0, %v823
        %v825 = vpop.f32.mrf.mxu0
        %v826 = vpop.f32.mrf.mxu0
        %v827 = vpop.f32.mrf.mxu0
        %828 = vdwg.mxu0
        %829 = vrot.lane.b32.xlu0 %v545, 120
        %v830 = vpop.permute.xlu0 %829
        %831 = vrot.lane.b32.xlu0 %v545, 88
        %v832 = vpop.permute.xlu0 %831
        %v834 = vsel %vm549, %v830, 0
        %v837 = vsel %vm549, %v832, 0
        %839 = vmatprep.subr.bf16.mxu0 0
        %840 = vmatpush1.bf16.xpose.msra.mxu0 0
        %841 = vmatprep.subr.bf16.mxu0 0
        %842 = vmatpush1.bf16.xpose.msra.mxu0 0
        %843 = vmatprep.subr.bf16.mxu0 0
        %844 = vmatpush1.bf16.xpose.msra.mxu0 0
        %845 = vmatprep.subr.bf16.mxu0 0
        %846 = vmatpush1.bf16.xpose.msra.mxu0 0
        %847 = vmatprep.subr.bf16.mxu0 0
        %848 = vmatpush1.bf16.xpose.msra.mxu0 0
        %849 = vmatprep.subr.bf16.mxu0 0
        %850 = vmatpush1.bf16.xpose.msra.mxu0 0
        %851 = vmatprep.subr.bf16.mxu0 0
        %852 = vmatpush1.bf16.xpose.msra.mxu0 0
        %853 = vmatprep.subr.bf16.mxu0 0
        %854 = vmatpush1.bf16.xpose.msra.mxu0 %v837
        %855 = vmatprep.subr.bf16.mxu0 0
        %856 = vmatpush2.bf16.xpose.msra.mxu0 0
        %857 = vmatprep.subr.bf16.mxu0 0
        %858 = vmatpush2.bf16.xpose.msra.mxu0 0
        %859 = vmatprep.subr.bf16.mxu0 0
        %860 = vmatpush2.bf16.xpose.msra.mxu0 0
        %861 = vmatprep.subr.bf16.mxu0 0
        %862 = vmatpush2.bf16.xpose.msra.mxu0 0
        %863 = vmatprep.subr.bf16.mxu0 0
        %864 = vmatpush2.bf16.xpose.msra.mxu0 0
        %865 = vmatprep.subr.bf16.mxu0 0
        %866 = vmatpush2.bf16.xpose.msra.mxu0 0
        %867 = vmatprep.subr.bf16.mxu0 0
        %868 = vmatpush2.bf16.xpose.msra.mxu0 0
        %869 = vmatprep.subr.bf16.mxu0 0
        %870 = vmatpush2.bf16.xpose.msra.mxu0 0
        %871 = vmatprep.mubr.bf16.mxu0 0
        %872 = vmatmul.mubr.bf16.gmra.mxu0 %v834
        %v873 = vpop.f32.mrf.mxu0
        %v874 = vadd.f32 0.0, %v873
        %v875 = vpop.f32.mrf.mxu0
        %v876 = vpop.f32.mrf.mxu0
        %v877 = vpop.f32.mrf.mxu0
        %878 = vdwg.mxu0
        %v879 = vsel %vm549, %v824, -inf
        %880 = vmax.xlane.f32.xlu0 %v879
        %v881 = vpop.xlane.xlu0 %880
        %v882 = vsel %vm549, %v874, -inf
        %883 = vmax.xlane.f32.xlu0 %v882
        %v884 = vpop.xlane.xlu0 %883
        %v885 = vsub.f32 %v824, %v881
        %v886 = vsub.f32 %v874, %v884
        %v887 = vmul.f32 %v885, 1.442695
        %v888 = vpow.pop %v887
        %v889 = vmul.f32 %v886, 1.442695
        %v890 = vpow.pop %v889
        %v891 = vpack.c.bf16 %v888, %v888
        %v892 = vpack.c.bf16 %v890, %v890
        %v893 = vunpack.c.l.bf16 %v891
        %v894 = vunpack.c.l.bf16 %v892
        %v895 = vsel %vm549, %v893, 0.0
        %896 = vadd.xlane.f32.xlu0 %v895
        %v897 = vpop.xlane.xlu0 %896
        %v898 = vsel %vm549, %v894, 0.0
        %899 = vadd.xlane.f32.xlu0 %v898
        %v900 = vpop.xlane.xlu0 %899
        %901 = vrot.lane.b32.xlu0 %v544, 56
        %v902 = vpop.permute.xlu0 %901
        %v904 = vsel %vm549, %v891, 0
        %v907 = vsel %vm672, %v902, 0
        %909 = vmatprep.subr.bf16.mxu0 0
        %910 = vmatpush1.bf16.msra.mxu0 0
        %911 = vmatprep.subr.bf16.mxu0 0
        %912 = vmatpush1.bf16.msra.mxu0 0
        %913 = vmatprep.subr.bf16.mxu0 0
        %914 = vmatpush1.bf16.msra.mxu0 0
        %915 = vmatprep.subr.bf16.mxu0 0
        %916 = vmatpush1.bf16.msra.mxu0 0
        %917 = vmatprep.subr.bf16.mxu0 0
        %918 = vmatpush1.bf16.msra.mxu0 0
        %919 = vmatprep.subr.bf16.mxu0 0
        %920 = vmatpush1.bf16.msra.mxu0 0
        %921 = vmatprep.subr.bf16.mxu0 0
        %922 = vmatpush1.bf16.msra.mxu0 0
        %923 = vmatprep.subr.bf16.mxu0 0
        %924 = vmatpush1.bf16.msra.mxu0 %v907
        %925 = vmatprep.subr.bf16.mxu0 0
        %926 = vmatpush2.bf16.msra.mxu0 0
        %927 = vmatprep.subr.bf16.mxu0 0
        %928 = vmatpush2.bf16.msra.mxu0 0
        %929 = vmatprep.subr.bf16.mxu0 0
        %930 = vmatpush2.bf16.msra.mxu0 0
        %931 = vmatprep.subr.bf16.mxu0 0
        %932 = vmatpush2.bf16.msra.mxu0 0
        %933 = vmatprep.subr.bf16.mxu0 0
        %934 = vmatpush2.bf16.msra.mxu0 0
        %935 = vmatprep.subr.bf16.mxu0 0
        %936 = vmatpush2.bf16.msra.mxu0 0
        %937 = vmatprep.subr.bf16.mxu0 0
        %938 = vmatpush2.bf16.msra.mxu0 0
        %939 = vmatprep.subr.bf16.mxu0 0
        %940 = vmatpush2.bf16.msra.mxu0 0
        %941 = vmatprep.mubr.bf16.mxu0 0
        %942 = vmatmul.mubr.bf16.gmra.mxu0 %v904
        %v943 = vpop.f32.mrf.mxu0
        %v944 = vadd.f32 0.0, %v943
        %v945 = vpop.f32.mrf.mxu0
        %v946 = vpop.f32.mrf.mxu0
        %v947 = vpop.f32.mrf.mxu0
        %948 = vdwg.mxu0
        %949 = vrot.lane.b32.xlu0 %v545, 56
        %v950 = vpop.permute.xlu0 %949
        %v952 = vsel %vm549, %v892, 0
        %v955 = vsel %vm672, %v950, 0
        %957 = vmatprep.subr.bf16.mxu0 0
        %958 = vmatpush1.bf16.msra.mxu0 0
        %959 = vmatprep.subr.bf16.mxu0 0
        %960 = vmatpush1.bf16.msra.mxu0 0
        %961 = vmatprep.subr.bf16.mxu0 0
        %962 = vmatpush1.bf16.msra.mxu0 0
        %963 = vmatprep.subr.bf16.mxu0 0
        %964 = vmatpush1.bf16.msra.mxu0 0
        %965 = vmatprep.subr.bf16.mxu0 0
        %966 = vmatpush1.bf16.msra.mxu0 0
        %967 = vmatprep.subr.bf16.mxu0 0
        %968 = vmatpush1.bf16.msra.mxu0 0
        %969 = vmatprep.subr.bf16.mxu0 0
        %970 = vmatpush1.bf16.msra.mxu0 0
        %971 = vmatprep.subr.bf16.mxu0 0
        %972 = vmatpush1.bf16.msra.mxu0 %v955
        %973 = vmatprep.subr.bf16.mxu0 0
        %974 = vmatpush2.bf16.msra.mxu0 0
        %975 = vmatprep.subr.bf16.mxu0 0
        %976 = vmatpush2.bf16.msra.mxu0 0
        %977 = vmatprep.subr.bf16.mxu0 0
        %978 = vmatpush2.bf16.msra.mxu0 0
        %979 = vmatprep.subr.bf16.mxu0 0
        %980 = vmatpush2.bf16.msra.mxu0 0
        %981 = vmatprep.subr.bf16.mxu0 0
        %982 = vmatpush2.bf16.msra.mxu0 0
        %983 = vmatprep.subr.bf16.mxu0 0
        %984 = vmatpush2.bf16.msra.mxu0 0
        %985 = vmatprep.subr.bf16.mxu0 0
        %986 = vmatpush2.bf16.msra.mxu0 0
        %987 = vmatprep.subr.bf16.mxu0 0
        %988 = vmatpush2.bf16.msra.mxu0 0
        %989 = vmatprep.mubr.bf16.mxu0 0
        %990 = vmatmul.mubr.bf16.gmra.mxu0 %v952
        %v991 = vpop.f32.mrf.mxu0
        %v992 = vadd.f32 0.0, %v991
        %v993 = vpop.f32.mrf.mxu0
        %v994 = vpop.f32.mrf.mxu0
        %v995 = vpop.f32.mrf.mxu0
        %996 = vdwg.mxu0
        %v997 = vrcp.pop %v897
        %v998 = vrcp.pop %v900
        %v999 = vmul.f32 %v944, %v997
        %v1000 = vmul.f32 %v992, %v998
        %v1001 = vpack.c.bf16 %v1000, %v999
        %v1003 = vunpack.c.l.b16 %v1001
        %v1004 = vunpack.c.h.b16 %v1001
        %v1005 = vpack.c.b16 %v1003, %v1003
        %v1006 = vpack.c.b16 %v1004, %v1004
        %1007 = vrot.lane.b32.xlu0 %v1005, 8
        %v1008 = vpop.permute.xlu0 %1007
        %1009 = vrot.lane.b32.xlu0 %v1006, 8
        %v1010 = vpop.permute.xlu0 %1009
        %vm1013 = vcmask 126016
        %1014 = vst.msk [vmem:[#allocation2] sm:$0xf] %vm1013, %v1008
        %1015 = vst.msk [vmem:[#allocation2 + $0x4] sm:$0xf] %vm1013, %v1010
        %1016 = vrot.lane.b32.xlu0 %v544, 112
        %v1017 = vpop.permute.xlu0 %1016
        %1018 = vrot.lane.b32.xlu0 %v544, 80
        %v1019 = vpop.permute.xlu0 %1018
        %v1021 = vsel %vm549, %v1017, 0
        %v1024 = vsel %vm549, %v1019, 0
        %1026 = vmatprep.subr.bf16.mxu0 0
        %1027 = vmatpush1.bf16.xpose.msra.mxu0 0
        %1028 = vmatprep.subr.bf16.mxu0 0
        %1029 = vmatpush1.bf16.xpose.msra.mxu0 0
        %1030 = vmatprep.subr.bf16.mxu0 0
        %1031 = vmatpush1.bf16.xpose.msra.mxu0 0
        %1032 = vmatprep.subr.bf16.mxu0 0
        %1033 = vmatpush1.bf16.xpose.msra.mxu0 0
        %1034 = vmatprep.subr.bf16.mxu0 0
        %1035 = vmatpush1.bf16.xpose.msra.mxu0 0
        %1036 = vmatprep.subr.bf16.mxu0 0
        %1037 = vmatpush1.bf16.xpose.msra.mxu0 0
        %1038 = vmatprep.subr.bf16.mxu0 0
        %1039 = vmatpush1.bf16.xpose.msra.mxu0 0
        %1040 = vmatprep.subr.bf16.mxu0 0
        %1041 = vmatpush1.bf16.xpose.msra.mxu0 %v1024
        %1042 = vmatprep.subr.bf16.mxu0 0
        %1043 = vmatpush2.bf16.xpose.msra.mxu0 0
        %1044 = vmatprep.subr.bf16.mxu0 0
        %1045 = vmatpush2.bf16.xpose.msra.mxu0 0
        %1046 = vmatprep.subr.bf16.mxu0 0
        %1047 = vmatpush2.bf16.xpose.msra.mxu0 0
        %1048 = vmatprep.subr.bf16.mxu0 0
        %1049 = vmatpush2.bf16.xpose.msra.mxu0 0
        %1050 = vmatprep.subr.bf16.mxu0 0
        %1051 = vmatpush2.bf16.xpose.msra.mxu0 0
        %1052 = vmatprep.subr.bf16.mxu0 0
        %1053 = vmatpush2.bf16.xpose.msra.mxu0 0
        %1054 = vmatprep.subr.bf16.mxu0 0
        %1055 = vmatpush2.bf16.xpose.msra.mxu0 0
        %1056 = vmatprep.subr.bf16.mxu0 0
        %1057 = vmatpush2.bf16.xpose.msra.mxu0 0
        %1058 = vmatprep.mubr.bf16.mxu0 0
        %1059 = vmatmul.mubr.bf16.gmra.mxu0 %v1021
        %v1060 = vpop.f32.mrf.mxu0
        %v1061 = vadd.f32 0.0, %v1060
        %v1062 = vpop.f32.mrf.mxu0
        %v1063 = vpop.f32.mrf.mxu0
        %v1064 = vpop.f32.mrf.mxu0
        %1065 = vdwg.mxu0
        %1066 = vrot.lane.b32.xlu0 %v545, 112
        %v1067 = vpop.permute.xlu0 %1066
        %1068 = vrot.lane.b32.xlu0 %v545, 80
        %v1069 = vpop.permute.xlu0 %1068
        %v1071 = vsel %vm549, %v1067, 0
        %v1074 = vsel %vm549, %v1069, 0
        %1076 = vmatprep.subr.bf16.mxu0 0
        %1077 = vmatpush1.bf16.xpose.msra.mxu0 0
        %1078 = vmatprep.subr.bf16.mxu0 0
        %1079 = vmatpush1.bf16.xpose.msra.mxu0 0
        %1080 = vmatprep.subr.bf16.mxu0 0
        %1081 = vmatpush1.bf16.xpose.msra.mxu0 0
        %1082 = vmatprep.subr.bf16.mxu0 0
        %1083 = vmatpush1.bf16.xpose.msra.mxu0 0
        %1084 = vmatprep.subr.bf16.mxu0 0
        %1085 = vmatpush1.bf16.xpose.msra.mxu0 0
        %1086 = vmatprep.subr.bf16.mxu0 0
        %1087 = vmatpush1.bf16.xpose.msra.mxu0 0
        %1088 = vmatprep.subr.bf16.mxu0 0
        %1089 = vmatpush1.bf16.xpose.msra.mxu0 0
        %1090 = vmatprep.subr.bf16.mxu0 0
        %1091 = vmatpush1.bf16.xpose.msra.mxu0 %v1074
        %1092 = vmatprep.subr.bf16.mxu0 0
        %1093 = vmatpush2.bf16.xpose.msra.mxu0 0
        %1094 = vmatprep.subr.bf16.mxu0 0
        %1095 = vmatpush2.bf16.xpose.msra.mxu0 0
        %1096 = vmatprep.subr.bf16.mxu0 0
        %1097 = vmatpush2.bf16.xpose.msra.mxu0 0
        %1098 = vmatprep.subr.bf16.mxu0 0
        %1099 = vmatpush2.bf16.xpose.msra.mxu0 0
        %1100 = vmatprep.subr.bf16.mxu0 0
        %1101 = vmatpush2.bf16.xpose.msra.mxu0 0
        %1102 = vmatprep.subr.bf16.mxu0 0
        %1103 = vmatpush2.bf16.xpose.msra.mxu0 0
        %1104 = vmatprep.subr.bf16.mxu0 0
        %1105 = vmatpush2.bf16.xpose.msra.mxu0 0
        %1106 = vmatprep.subr.bf16.mxu0 0
        %1107 = vmatpush2.bf16.xpose.msra.mxu0 0
        %1108 = vmatprep.mubr.bf16.mxu0 0
        %1109 = vmatmul.mubr.bf16.gmra.mxu0 %v1071
        %v1110 = vpop.f32.mrf.mxu0
        %v1111 = vadd.f32 0.0, %v1110
        %v1112 = vpop.f32.mrf.mxu0
        %v1113 = vpop.f32.mrf.mxu0
        %v1114 = vpop.f32.mrf.mxu0
        %1115 = vdwg.mxu0
        %v1116 = vsel %vm549, %v1061, -inf
        %1117 = vmax.xlane.f32.xlu0 %v1116
        %v1118 = vpop.xlane.xlu0 %1117
        %v1119 = vsel %vm549, %v1111, -inf
        %1120 = vmax.xlane.f32.xlu0 %v1119
        %v1121 = vpop.xlane.xlu0 %1120
        %v1122 = vsub.f32 %v1061, %v1118
        %v1123 = vsub.f32 %v1111, %v1121
        %v1124 = vmul.f32 %v1122, 1.442695
        %v1125 = vpow.pop %v1124
        %v1126 = vmul.f32 %v1123, 1.442695
        %v1127 = vpow.pop %v1126
        %v1128 = vpack.c.bf16 %v1125, %v1125
        %v1129 = vpack.c.bf16 %v1127, %v1127
        %v1130 = vunpack.c.l.bf16 %v1128
        %v1131 = vunpack.c.l.bf16 %v1129
        %v1132 = vsel %vm549, %v1130, 0.0
        %1133 = vadd.xlane.f32.xlu0 %v1132
        %v1134 = vpop.xlane.xlu0 %1133
        %v1135 = vsel %vm549, %v1131, 0.0
        %1136 = vadd.xlane.f32.xlu0 %v1135
        %v1137 = vpop.xlane.xlu0 %1136
        %1138 = vrot.lane.b32.xlu0 %v544, 48
        %v1139 = vpop.permute.xlu0 %1138
        %v1141 = vsel %vm549, %v1128, 0
        %v1144 = vsel %vm672, %v1139, 0
        %1146 = vmatprep.subr.bf16.mxu0 0
        %1147 = vmatpush1.bf16.msra.mxu0 0
        %1148 = vmatprep.subr.bf16.mxu0 0
        %1149 = vmatpush1.bf16.msra.mxu0 0
        %1150 = vmatprep.subr.bf16.mxu0 0
        %1151 = vmatpush1.bf16.msra.mxu0 0
        %1152 = vmatprep.subr.bf16.mxu0 0
        %1153 = vmatpush1.bf16.msra.mxu0 0
        %1154 = vmatprep.subr.bf16.mxu0 0
        %1155 = vmatpush1.bf16.msra.mxu0 0
        %1156 = vmatprep.subr.bf16.mxu0 0
        %1157 = vmatpush1.bf16.msra.mxu0 0
        %1158 = vmatprep.subr.bf16.mxu0 0
        %1159 = vmatpush1.bf16.msra.mxu0 0
        %1160 = vmatprep.subr.bf16.mxu0 0
        %1161 = vmatpush1.bf16.msra.mxu0 %v1144
        %1162 = vmatprep.subr.bf16.mxu0 0
        %1163 = vmatpush2.bf16.msra.mxu0 0
        %1164 = vmatprep.subr.bf16.mxu0 0
        %1165 = vmatpush2.bf16.msra.mxu0 0
        %1166 = vmatprep.subr.bf16.mxu0 0
        %1167 = vmatpush2.bf16.msra.mxu0 0
        %1168 = vmatprep.subr.bf16.mxu0 0
        %1169 = vmatpush2.bf16.msra.mxu0 0
        %1170 = vmatprep.subr.bf16.mxu0 0
        %1171 = vmatpush2.bf16.msra.mxu0 0
        %1172 = vmatprep.subr.bf16.mxu0 0
        %1173 = vmatpush2.bf16.msra.mxu0 0
        %1174 = vmatprep.subr.bf16.mxu0 0
        %1175 = vmatpush2.bf16.msra.mxu0 0
        %1176 = vmatprep.subr.bf16.mxu0 0
        %1177 = vmatpush2.bf16.msra.mxu0 0
        %1178 = vmatprep.mubr.bf16.mxu0 0
        %1179 = vmatmul.mubr.bf16.gmra.mxu0 %v1141
        %v1180 = vpop.f32.mrf.mxu0
        %v1181 = vadd.f32 0.0, %v1180
        %v1182 = vpop.f32.mrf.mxu0
        %v1183 = vpop.f32.mrf.mxu0
        %v1184 = vpop.f32.mrf.mxu0
        %1185 = vdwg.mxu0
        %1186 = vrot.lane.b32.xlu0 %v545, 48
        %v1187 = vpop.permute.xlu0 %1186
        %v1189 = vsel %vm549, %v1129, 0
        %v1192 = vsel %vm672, %v1187, 0
        %1194 = vmatprep.subr.bf16.mxu0 0
        %1195 = vmatpush1.bf16.msra.mxu0 0
        %1196 = vmatprep.subr.bf16.mxu0 0
        %1197 = vmatpush1.bf16.msra.mxu0 0
        %1198 = vmatprep.subr.bf16.mxu0 0
        %1199 = vmatpush1.bf16.msra.mxu0 0
        %1200 = vmatprep.subr.bf16.mxu0 0
        %1201 = vmatpush1.bf16.msra.mxu0 0
        %1202 = vmatprep.subr.bf16.mxu0 0
        %1203 = vmatpush1.bf16.msra.mxu0 0
        %1204 = vmatprep.subr.bf16.mxu0 0
        %1205 = vmatpush1.bf16.msra.mxu0 0
        %1206 = vmatprep.subr.bf16.mxu0 0
        %1207 = vmatpush1.bf16.msra.mxu0 0
        %1208 = vmatprep.subr.bf16.mxu0 0
        %1209 = vmatpush1.bf16.msra.mxu0 %v1192
        %1210 = vmatprep.subr.bf16.mxu0 0
        %1211 = vmatpush2.bf16.msra.mxu0 0
        %1212 = vmatprep.subr.bf16.mxu0 0
        %1213 = vmatpush2.bf16.msra.mxu0 0
        %1214 = vmatprep.subr.bf16.mxu0 0
        %1215 = vmatpush2.bf16.msra.mxu0 0
        %1216 = vmatprep.subr.bf16.mxu0 0
        %1217 = vmatpush2.bf16.msra.mxu0 0
        %1218 = vmatprep.subr.bf16.mxu0 0
        %1219 = vmatpush2.bf16.msra.mxu0 0
        %1220 = vmatprep.subr.bf16.mxu0 0
        %1221 = vmatpush2.bf16.msra.mxu0 0
        %1222 = vmatprep.subr.bf16.mxu0 0
        %1223 = vmatpush2.bf16.msra.mxu0 0
        %1224 = vmatprep.subr.bf16.mxu0 0
        %1225 = vmatpush2.bf16.msra.mxu0 0
        %1226 = vmatprep.mubr.bf16.mxu0 0
        %1227 = vmatmul.mubr.bf16.gmra.mxu0 %v1189
        %v1228 = vpop.f32.mrf.mxu0
        %v1229 = vadd.f32 0.0, %v1228
        %v1230 = vpop.f32.mrf.mxu0
        %v1231 = vpop.f32.mrf.mxu0
        %v1232 = vpop.f32.mrf.mxu0
        %1233 = vdwg.mxu0
        %v1234 = vrcp.pop %v1134
        %v1235 = vrcp.pop %v1137
        %v1236 = vmul.f32 %v1181, %v1234
        %v1237 = vmul.f32 %v1229, %v1235
        %v1238 = vpack.c.bf16 %v1237, %v1236
        %v1240 = vunpack.c.l.b16 %v1238
        %v1241 = vunpack.c.h.b16 %v1238
        %v1242 = vpack.c.b16 %v1240, %v1240
        %v1243 = vpack.c.b16 %v1241, %v1241
        %1244 = vrot.lane.b32.xlu0 %v1242, 16
        %v1245 = vpop.permute.xlu0 %1244
        %1246 = vrot.lane.b32.xlu0 %v1243, 16
        %v1247 = vpop.permute.xlu0 %1246
        %vm1250 = vcmask 191616
        %1251 = vst.msk [vmem:[#allocation2] sm:$0xf] %vm1250, %v1245
        %1252 = vst.msk [vmem:[#allocation2 + $0x4] sm:$0xf] %vm1250, %v1247
        %1253 = vrot.lane.b32.xlu0 %v544, 104
        %v1254 = vpop.permute.xlu0 %1253
        %1255 = vrot.lane.b32.xlu0 %v544, 72
        %v1256 = vpop.permute.xlu0 %1255
        %v1258 = vsel %vm549, %v1254, 0
        %v1261 = vsel %vm549, %v1256, 0
        %1263 = vmatprep.subr.bf16.mxu0 0
        %1264 = vmatpush1.bf16.xpose.msra.mxu0 0
        %1265 = vmatprep.subr.bf16.mxu0 0
        %1266 = vmatpush1.bf16.xpose.msra.mxu0 0
        %1267 = vmatprep.subr.bf16.mxu0 0
        %1268 = vmatpush1.bf16.xpose.msra.mxu0 0
        %1269 = vmatprep.subr.bf16.mxu0 0
        %1270 = vmatpush1.bf16.xpose.msra.mxu0 0
        %1271 = vmatprep.subr.bf16.mxu0 0
        %1272 = vmatpush1.bf16.xpose.msra.mxu0 0
        %1273 = vmatprep.subr.bf16.mxu0 0
        %1274 = vmatpush1.bf16.xpose.msra.mxu0 0
        %1275 = vmatprep.subr.bf16.mxu0 0
        %1276 = vmatpush1.bf16.xpose.msra.mxu0 0
        %1277 = vmatprep.subr.bf16.mxu0 0
        %1278 = vmatpush1.bf16.xpose.msra.mxu0 %v1261
        %1279 = vmatprep.subr.bf16.mxu0 0
        %1280 = vmatpush2.bf16.xpose.msra.mxu0 0
        %1281 = vmatprep.subr.bf16.mxu0 0
        %1282 = vmatpush2.bf16.xpose.msra.mxu0 0
        %1283 = vmatprep.subr.bf16.mxu0 0
        %1284 = vmatpush2.bf16.xpose.msra.mxu0 0
        %1285 = vmatprep.subr.bf16.mxu0 0
        %1286 = vmatpush2.bf16.xpose.msra.mxu0 0
        %1287 = vmatprep.subr.bf16.mxu0 0
        %1288 = vmatpush2.bf16.xpose.msra.mxu0 0
        %1289 = vmatprep.subr.bf16.mxu0 0
        %1290 = vmatpush2.bf16.xpose.msra.mxu0 0
        %1291 = vmatprep.subr.bf16.mxu0 0
        %1292 = vmatpush2.bf16.xpose.msra.mxu0 0
        %1293 = vmatprep.subr.bf16.mxu0 0
        %1294 = vmatpush2.bf16.xpose.msra.mxu0 0
        %1295 = vmatprep.mubr.bf16.mxu0 0
        %1296 = vmatmul.mubr.bf16.gmra.mxu0 %v1258
        %v1297 = vpop.f32.mrf.mxu0
        %v1298 = vadd.f32 0.0, %v1297
        %v1299 = vpop.f32.mrf.mxu0
        %v1300 = vpop.f32.mrf.mxu0
        %v1301 = vpop.f32.mrf.mxu0
        %1302 = vdwg.mxu0
        %1303 = vrot.lane.b32.xlu0 %v545, 104
        %v1304 = vpop.permute.xlu0 %1303
        %1305 = vrot.lane.b32.xlu0 %v545, 72
        %v1306 = vpop.permute.xlu0 %1305
        %v1308 = vsel %vm549, %v1304, 0
        %v1311 = vsel %vm549, %v1306, 0
        %1313 = vmatprep.subr.bf16.mxu0 0
        %1314 = vmatpush1.bf16.xpose.msra.mxu0 0
        %1315 = vmatprep.subr.bf16.mxu0 0
        %1316 = vmatpush1.bf16.xpose.msra.mxu0 0
        %1317 = vmatprep.subr.bf16.mxu0 0
        %1318 = vmatpush1.bf16.xpose.msra.mxu0 0
        %1319 = vmatprep.subr.bf16.mxu0 0
        %1320 = vmatpush1.bf16.xpose.msra.mxu0 0
        %1321 = vmatprep.subr.bf16.mxu0 0
        %1322 = vmatpush1.bf16.xpose.msra.mxu0 0
        %1323 = vmatprep.subr.bf16.mxu0 0
        %1324 = vmatpush1.bf16.xpose.msra.mxu0 0
        %1325 = vmatprep.subr.bf16.mxu0 0
        %1326 = vmatpush1.bf16.xpose.msra.mxu0 0
        %1327 = vmatprep.subr.bf16.mxu0 0
        %1328 = vmatpush1.bf16.xpose.msra.mxu0 %v1311
        %1329 = vmatprep.subr.bf16.mxu0 0
        %1330 = vmatpush2.bf16.xpose.msra.mxu0 0
        %1331 = vmatprep.subr.bf16.mxu0 0
        %1332 = vmatpush2.bf16.xpose.msra.mxu0 0
        %1333 = vmatprep.subr.bf16.mxu0 0
        %1334 = vmatpush2.bf16.xpose.msra.mxu0 0
        %1335 = vmatprep.subr.bf16.mxu0 0
        %1336 = vmatpush2.bf16.xpose.msra.mxu0 0
        %1337 = vmatprep.subr.bf16.mxu0 0
        %1338 = vmatpush2.bf16.xpose.msra.mxu0 0
        %1339 = vmatprep.subr.bf16.mxu0 0
        %1340 = vmatpush2.bf16.xpose.msra.mxu0 0
        %1341 = vmatprep.subr.bf16.mxu0 0
        %1342 = vmatpush2.bf16.xpose.msra.mxu0 0
        %1343 = vmatprep.subr.bf16.mxu0 0
        %1344 = vmatpush2.bf16.xpose.msra.mxu0 0
        %1345 = vmatprep.mubr.bf16.mxu0 0
        %1346 = vmatmul.mubr.bf16.gmra.mxu0 %v1308
        %v1347 = vpop.f32.mrf.mxu0
        %v1348 = vadd.f32 0.0, %v1347
        %v1349 = vpop.f32.mrf.mxu0
        %v1350 = vpop.f32.mrf.mxu0
        %v1351 = vpop.f32.mrf.mxu0
        %1352 = vdwg.mxu0
        %v1353 = vsel %vm549, %v1298, -inf
        %1354 = vmax.xlane.f32.xlu0 %v1353
        %v1355 = vpop.xlane.xlu0 %1354
        %v1356 = vsel %vm549, %v1348, -inf
        %1357 = vmax.xlane.f32.xlu0 %v1356
        %v1358 = vpop.xlane.xlu0 %1357
        %v1359 = vsub.f32 %v1298, %v1355
        %v1360 = vsub.f32 %v1348, %v1358
        %v1361 = vmul.f32 %v1359, 1.442695
        %v1362 = vpow.pop %v1361
        %v1363 = vmul.f32 %v1360, 1.442695
        %v1364 = vpow.pop %v1363
        %v1365 = vpack.c.bf16 %v1362, %v1362
        %v1366 = vpack.c.bf16 %v1364, %v1364
        %v1367 = vunpack.c.l.bf16 %v1365
        %v1368 = vunpack.c.l.bf16 %v1366
        %v1369 = vsel %vm549, %v1367, 0.0
        %1370 = vadd.xlane.f32.xlu0 %v1369
        %v1371 = vpop.xlane.xlu0 %1370
        %v1372 = vsel %vm549, %v1368, 0.0
        %1373 = vadd.xlane.f32.xlu0 %v1372
        %v1374 = vpop.xlane.xlu0 %1373
        %1375 = vrot.lane.b32.xlu0 %v544, 40
        %v1376 = vpop.permute.xlu0 %1375
        %v1378 = vsel %vm549, %v1365, 0
        %v1381 = vsel %vm672, %v1376, 0
        %1383 = vmatprep.subr.bf16.mxu0 0
        %1384 = vmatpush1.bf16.msra.mxu0 0
        %1385 = vmatprep.subr.bf16.mxu0 0
        %1386 = vmatpush1.bf16.msra.mxu0 0
        %1387 = vmatprep.subr.bf16.mxu0 0
        %1388 = vmatpush1.bf16.msra.mxu0 0
        %1389 = vmatprep.subr.bf16.mxu0 0
        %1390 = vmatpush1.bf16.msra.mxu0 0
        %1391 = vmatprep.subr.bf16.mxu0 0
        %1392 = vmatpush1.bf16.msra.mxu0 0
        %1393 = vmatprep.subr.bf16.mxu0 0
        %1394 = vmatpush1.bf16.msra.mxu0 0
        %1395 = vmatprep.subr.bf16.mxu0 0
        %1396 = vmatpush1.bf16.msra.mxu0 0
        %1397 = vmatprep.subr.bf16.mxu0 0
        %1398 = vmatpush1.bf16.msra.mxu0 %v1381
        %1399 = vmatprep.subr.bf16.mxu0 0
        %1400 = vmatpush2.bf16.msra.mxu0 0
        %1401 = vmatprep.subr.bf16.mxu0 0
        %1402 = vmatpush2.bf16.msra.mxu0 0
        %1403 = vmatprep.subr.bf16.mxu0 0
        %1404 = vmatpush2.bf16.msra.mxu0 0
        %1405 = vmatprep.subr.bf16.mxu0 0
        %1406 = vmatpush2.bf16.msra.mxu0 0
        %1407 = vmatprep.subr.bf16.mxu0 0
        %1408 = vmatpush2.bf16.msra.mxu0 0
        %1409 = vmatprep.subr.bf16.mxu0 0
        %1410 = vmatpush2.bf16.msra.mxu0 0
        %1411 = vmatprep.subr.bf16.mxu0 0
        %1412 = vmatpush2.bf16.msra.mxu0 0
        %1413 = vmatprep.subr.bf16.mxu0 0
        %1414 = vmatpush2.bf16.msra.mxu0 0
        %1415 = vmatprep.mubr.bf16.mxu0 0
        %1416 = vmatmul.mubr.bf16.gmra.mxu0 %v1378
        %v1417 = vpop.f32.mrf.mxu0
        %v1418 = vadd.f32 0.0, %v1417
        %v1419 = vpop.f32.mrf.mxu0
        %v1420 = vpop.f32.mrf.mxu0
        %v1421 = vpop.f32.mrf.mxu0
        %1422 = vdwg.mxu0
        %1423 = vrot.lane.b32.xlu0 %v545, 40
        %v1424 = vpop.permute.xlu0 %1423
        %v1426 = vsel %vm549, %v1366, 0
        %v1429 = vsel %vm672, %v1424, 0
        %1431 = vmatprep.subr.bf16.mxu0 0
        %1432 = vmatpush1.bf16.msra.mxu0 0
        %1433 = vmatprep.subr.bf16.mxu0 0
        %1434 = vmatpush1.bf16.msra.mxu0 0
        %1435 = vmatprep.subr.bf16.mxu0 0
        %1436 = vmatpush1.bf16.msra.mxu0 0
        %1437 = vmatprep.subr.bf16.mxu0 0
        %1438 = vmatpush1.bf16.msra.mxu0 0
        %1439 = vmatprep.subr.bf16.mxu0 0
        %1440 = vmatpush1.bf16.msra.mxu0 0
        %1441 = vmatprep.subr.bf16.mxu0 0
        %1442 = vmatpush1.bf16.msra.mxu0 0
        %1443 = vmatprep.subr.bf16.mxu0 0
        %1444 = vmatpush1.bf16.msra.mxu0 0
        %1445 = vmatprep.subr.bf16.mxu0 0
        %1446 = vmatpush1.bf16.msra.mxu0 %v1429
        %1447 = vmatprep.subr.bf16.mxu0 0
        %1448 = vmatpush2.bf16.msra.mxu0 0
        %1449 = vmatprep.subr.bf16.mxu0 0
        %1450 = vmatpush2.bf16.msra.mxu0 0
        %1451 = vmatprep.subr.bf16.mxu0 0
        %1452 = vmatpush2.bf16.msra.mxu0 0
        %1453 = vmatprep.subr.bf16.mxu0 0
        %1454 = vmatpush2.bf16.msra.mxu0 0
        %1455 = vmatprep.subr.bf16.mxu0 0
        %1456 = vmatpush2.bf16.msra.mxu0 0
        %1457 = vmatprep.subr.bf16.mxu0 0
        %1458 = vmatpush2.bf16.msra.mxu0 0
        %1459 = vmatprep.subr.bf16.mxu0 0
        %1460 = vmatpush2.bf16.msra.mxu0 0
        %1461 = vmatprep.subr.bf16.mxu0 0
        %1462 = vmatpush2.bf16.msra.mxu0 0
        %1463 = vmatprep.mubr.bf16.mxu0 0
        %1464 = vmatmul.mubr.bf16.gmra.mxu0 %v1426
        %v1465 = vpop.f32.mrf.mxu0
        %v1466 = vadd.f32 0.0, %v1465
        %v1467 = vpop.f32.mrf.mxu0
        %v1468 = vpop.f32.mrf.mxu0
        %v1469 = vpop.f32.mrf.mxu0
        %1470 = vdwg.mxu0
        %v1471 = vrcp.pop %v1371
        %v1472 = vrcp.pop %v1374
        %v1473 = vmul.f32 %v1418, %v1471
        %v1474 = vmul.f32 %v1466, %v1472
        %v1475 = vpack.c.bf16 %v1474, %v1473
        %v1477 = vunpack.c.l.b16 %v1475
        %v1478 = vunpack.c.h.b16 %v1475
        %v1479 = vpack.c.b16 %v1477, %v1477
        %v1480 = vpack.c.b16 %v1478, %v1478
        %1481 = vrot.lane.b32.xlu0 %v1479, 24
        %v1482 = vpop.permute.xlu0 %1481
        %1483 = vrot.lane.b32.xlu0 %v1480, 24
        %v1484 = vpop.permute.xlu0 %1483
        %vm1487 = vcmask 257216
        %1488 = vst.msk [vmem:[#allocation2] sm:$0xf] %vm1487, %v1482
        %1489 = vst.msk [vmem:[#allocation2 + $0x4] sm:$0xf] %vm1487, %v1484
        %v1490 = vld [vmem:[#allocation2] sm:$0xf]
        %v1491 = vld [vmem:[#allocation2 + $0x4] sm:$0xf]
        %v1492 = vld [vmem:[#allocation3] sm:$0xf]
        %v1493 = vld [vmem:[#allocation3 + $0x4] sm:$0xf]
        %v1494 = vld [vmem:[#allocation3 + $0x8] sm:$0xf]
        %v1495 = vld [vmem:[#allocation3 + $0xc] sm:$0xf]
        %v1496 = vld [vmem:[%s4] sm:$0x1]
        %v1498 = vlaneseq
        %v1499 = vshrl.u32 %v1498, 7
        %v1500 = vsub.s32 0, %v1499
        %v1501 = vrot.slane %v1496, %v1500
        %v1505 = vunpack.c.l.b16 %v1490
        %v1506 = vunpack.c.l.b16 %v1491
        %v1507 = vpack.c.b16 %v1506, %v1505
        %v1512 = vunpack.c.l.b16 %v1492
        %v1513 = vunpack.c.l.b16 %v1493
        %v1514 = vunpack.c.l.b16 %v1494
        %v1515 = vunpack.c.l.b16 %v1495
        %v1516 = vpack.c.b16 %v1513, %v1512
        %v1517 = vpack.c.b16 %v1515, %v1514
        %v1521 = vsel %vm499, %v1507, 0
        %1523 = vmatprep.subr.bf16.mxu0 0
        %1524 = vmatpush1.bf16.msra.mxu0 0
        %1525 = vmatprep.subr.bf16.mxu0 0
        %1526 = vmatpush1.bf16.msra.mxu0 0
        %1527 = vmatprep.subr.bf16.mxu0 0
        %1528 = vmatpush1.bf16.msra.mxu0 0
        %1529 = vmatprep.subr.bf16.mxu0 0
        %1530 = vmatpush1.bf16.msra.mxu0 0
        %1531 = vmatprep.subr.bf16.mxu0 0
        %1532 = vmatpush1.bf16.msra.mxu0 0
        %1533 = vmatprep.subr.bf16.mxu0 0
        %1534 = vmatpush1.bf16.msra.mxu0 0
        %1535 = vmatprep.subr.bf16.mxu0 0
        %1536 = vmatpush1.bf16.msra.mxu0 %v1517
        %1537 = vmatprep.subr.bf16.mxu0 0
        %1538 = vmatpush1.bf16.msra.mxu0 %v1516
        %1539 = vmatprep.subr.bf16.mxu0 0
        %1540 = vmatpush2.bf16.msra.mxu0 0
        %1541 = vmatprep.subr.bf16.mxu0 0
        %1542 = vmatpush2.bf16.msra.mxu0 0
        %1543 = vmatprep.subr.bf16.mxu0 0
        %1544 = vmatpush2.bf16.msra.mxu0 0
        %1545 = vmatprep.subr.bf16.mxu0 0
        %1546 = vmatpush2.bf16.msra.mxu0 0
        %1547 = vmatprep.subr.bf16.mxu0 0
        %1548 = vmatpush2.bf16.msra.mxu0 0
        %1549 = vmatprep.subr.bf16.mxu0 0
        %1550 = vmatpush2.bf16.msra.mxu0 0
        %1551 = vmatprep.subr.bf16.mxu0 0
        %1552 = vmatpush2.bf16.msra.mxu0 0
        %1553 = vmatprep.subr.bf16.mxu0 0
        %1554 = vmatpush2.bf16.msra.mxu0 0
        %1555 = vmatprep.mubr.bf16.mxu0 0
        %1556 = vmatmul.mubr.bf16.gmra.mxu0 %v1521
        %v1557 = vpop.f32.mrf.mxu0
        %v1558 = vadd.f32 %v1501, %v1557
        %v1559 = vpop.f32.mrf.mxu0
        %v1560 = vpop.f32.mrf.mxu0
        %v1561 = vadd.f32 %v1501, %v1560
        %v1562 = vpop.f32.mrf.mxu0
        %1563 = vdwg.mxu0
        %v1564 = vadd.f32 %v473, %v1558
        %v1565 = vadd.f32 %v474, %v1561
        %v1566 = vld [vmem:[%s9] sm:$0x1]
        %v1567 = vld [vmem:[%s10] sm:$0x1]
        %v1568 = vsel %vm499, %v1564, 0.0
        %1569 = vadd.xlane.f32.xlu0 %v1568
        %v1570 = vpop.xlane.xlu0 %1569
        %v1571 = vsel %vm499, %v1565, 0.0
        %1572 = vadd.xlane.f32.xlu0 %v1571
        %v1573 = vpop.xlane.xlu0 %1572
        %v1574 = vrcp.pop 32.0
        %v1575 = vmul.f32 %v1570, %v1574
        %v1576 = vmul.f32 %v1573, %v1574
        %v1577 = vsub.f32 %v1564, %v1575
        %v1578 = vsub.f32 %v1565, %v1576
        %v1579 = vmul.f32 %v1577, %v1577
        %v1580 = vmul.f32 %v1578, %v1578
        %v1581 = vsel %vm499, %v1579, 0.0
        %1582 = vadd.xlane.f32.xlu0 %v1581
        %v1583 = vpop.xlane.xlu0 %1582
        %v1584 = vsel %vm499, %v1580, 0.0
        %1585 = vadd.xlane.f32.xlu0 %v1584
        %v1586 = vpop.xlane.xlu0 %1585
        %v1587 = vmul.f32 %v1583, %v1574
        %v1588 = vmul.f32 %v1586, %v1574
        %v1589 = vadd.f32 %v1587, 1e-05
        %v1590 = vadd.f32 %v1588, 1e-05
        %v1591 = vrsqrt.pop %v1589
        %v1592 = vrsqrt.pop %v1590
        %v1593 = vmul.f32 %v1577, %v1591
        %v1594 = vmul.f32 %v1578, %v1592
        %v1596 = vlaneseq
        %v1597 = vshrl.u32 %v1596, 7
        %v1598 = vsub.s32 0, %v1597
        %v1599 = vrot.slane %v1566, %v1598
        %v1601 = vmul.f32 %v1593, %v1599
        %v1602 = vmul.f32 %v1594, %v1599
        %v1604 = vlaneseq
        %v1605 = vshrl.u32 %v1604, 7
        %v1606 = vsub.s32 0, %v1605
        %v1607 = vrot.slane %v1567, %v1606
        %v1609 = vadd.f32 %v1601, %v1607
        %v1610 = vadd.f32 %v1602, %v1607
        %v1611 = vpack.c.bf16 %v1610, %v1609
        %v1612 = vld [vmem:[#allocation6] sm:$0xf]
        %v1613 = vld [vmem:[#allocation6 + $0x4] sm:$0xf]
        %v1614 = vld [vmem:[#allocation6 + $0x8] sm:$0xf]
        %v1615 = vld [vmem:[#allocation6 + $0xc] sm:$0xf]
        %v1616 = vld [vmem:[%s6] sm:$0x1]
        %v1618 = vlaneseq
        %v1619 = vshrl.u32 %v1618, 7
        %v1620 = vsub.s32 0, %v1619
        %v1621 = vrot.slane %v1616, %v1620
        %v1627 = vunpack.c.l.b16 %v1612
        %v1628 = vunpack.c.l.b16 %v1613
        %v1629 = vunpack.c.l.b16 %v1614
        %v1630 = vunpack.c.l.b16 %v1615
        %v1631 = vpack.c.b16 %v1628, %v1627
        %v1632 = vpack.c.b16 %v1630, %v1629
        %v1636 = vsel %vm499, %v1611, 0
        %1638 = vmatprep.subr.bf16.mxu0 0
        %1639 = vmatpush1.bf16.msra.mxu0 0
        %1640 = vmatprep.subr.bf16.mxu0 0
        %1641 = vmatpush1.bf16.msra.mxu0 0
        %1642 = vmatprep.subr.bf16.mxu0 0
        %1643 = vmatpush1.bf16.msra.mxu0 0
        %1644 = vmatprep.subr.bf16.mxu0 0
        %1645 = vmatpush1.bf16.msra.mxu0 0
        %1646 = vmatprep.subr.bf16.mxu0 0
        %1647 = vmatpush1.bf16.msra.mxu0 0
        %1648 = vmatprep.subr.bf16.mxu0 0
        %1649 = vmatpush1.bf16.msra.mxu0 0
        %1650 = vmatprep.subr.bf16.mxu0 0
        %1651 = vmatpush1.bf16.msra.mxu0 %v1632
        %1652 = vmatprep.subr.bf16.mxu0 0
        %1653 = vmatpush1.bf16.msra.mxu0 %v1631
        %1654 = vmatprep.subr.bf16.mxu0 0
        %1655 = vmatpush2.bf16.msra.mxu0 0
        %1656 = vmatprep.subr.bf16.mxu0 0
        %1657 = vmatpush2.bf16.msra.mxu0 0
        %1658 = vmatprep.subr.bf16.mxu0 0
        %1659 = vmatpush2.bf16.msra.mxu0 0
        %1660 = vmatprep.subr.bf16.mxu0 0
        %1661 = vmatpush2.bf16.msra.mxu0 0
        %1662 = vmatprep.subr.bf16.mxu0 0
        %1663 = vmatpush2.bf16.msra.mxu0 0
        %1664 = vmatprep.subr.bf16.mxu0 0
        %1665 = vmatpush2.bf16.msra.mxu0 0
        %1666 = vmatprep.subr.bf16.mxu0 0
        %1667 = vmatpush2.bf16.msra.mxu0 0
        %1668 = vmatprep.subr.bf16.mxu0 0
        %1669 = vmatpush2.bf16.msra.mxu0 0
        %1670 = vmatprep.mubr.bf16.mxu0 0
        %1671 = vmatmul.mubr.bf16.gmra.mxu0 %v1636
        %v1672 = vpop.f32.mrf.mxu0
        %v1673 = vadd.f32 %v1621, %v1672
        %v1674 = vpop.f32.mrf.mxu0
        %v1675 = vpop.f32.mrf.mxu0
        %v1676 = vadd.f32 %v1621, %v1675
        %v1677 = vpop.f32.mrf.mxu0
        %1678 = vdwg.mxu0
        %v1679 = vmax.f32 %v1673, 0.0
        %v1680 = vmax.f32 %v1676, 0.0
        %v1681 = vpack.c.bf16 %v1680, %v1679
        %v1682 = vld [vmem:[%s7] sm:$0xf]
        %v1683 = vld [vmem:[%s7 + $0x4] sm:$0xf]
        %v1684 = vld [vmem:[%s7 + $0x8] sm:$0xf]
        %v1685 = vld [vmem:[%s7 + $0xc] sm:$0xf]
        %v1686 = vld [vmem:[%s7 + $0x10] sm:$0xf]
        %v1687 = vld [vmem:[%s7 + $0x14] sm:$0xf]
        %v1688 = vld [vmem:[%s7 + $0x18] sm:$0xf]
        %v1689 = vld [vmem:[%s7 + $0x1c] sm:$0xf]
        %v1690 = vld [vmem:[%s8] sm:$0x1]
        %v1692 = vlaneseq
        %v1693 = vshrl.u32 %v1692, 7
        %v1694 = vsub.s32 0, %v1693
        %v1695 = vrot.slane %v1690, %v1694
        %v1705 = vunpack.c.l.b16 %v1682
        %v1706 = vunpack.c.l.b16 %v1683
        %v1707 = vunpack.c.l.b16 %v1684
        %v1708 = vunpack.c.l.b16 %v1685
        %v1709 = vunpack.c.l.b16 %v1686
        %v1710 = vunpack.c.l.b16 %v1687
        %v1711 = vunpack.c.l.b16 %v1688
        %v1712 = vunpack.c.l.b16 %v1689
        %v1713 = vpack.c.b16 %v1706, %v1705
        %v1714 = vpack.c.b16 %v1708, %v1707
        %v1715 = vpack.c.b16 %v1710, %v1709
        %v1716 = vpack.c.b16 %v1712, %v1711
        %vm1721 = vcmask 523264
        %v1723 = vsel %vm1721, %v1681, 0
        %1725 = vmatprep.subr.bf16.mxu0 0
        %1726 = vmatpush1.bf16.msra.mxu0 0
        %1727 = vmatprep.subr.bf16.mxu0 0
        %1728 = vmatpush1.bf16.msra.mxu0 0
        %1729 = vmatprep.subr.bf16.mxu0 0
        %1730 = vmatpush1.bf16.msra.mxu0 0
        %1731 = vmatprep.subr.bf16.mxu0 0
        %1732 = vmatpush1.bf16.msra.mxu0 0
        %1733 = vmatprep.subr.bf16.mxu0 0
        %1734 = vmatpush1.bf16.msra.mxu0 %v1716
        %1735 = vmatprep.subr.bf16.mxu0 0
        %1736 = vmatpush1.bf16.msra.mxu0 %v1715
        %1737 = vmatprep.subr.bf16.mxu0 0
        %1738 = vmatpush1.bf16.msra.mxu0 %v1714
        %1739 = vmatprep.subr.bf16.mxu0 0
        %1740 = vmatpush1.bf16.msra.mxu0 %v1713
        %1741 = vmatprep.subr.bf16.mxu0 0
        %1742 = vmatpush2.bf16.msra.mxu0 0
        %1743 = vmatprep.subr.bf16.mxu0 0
        %1744 = vmatpush2.bf16.msra.mxu0 0
        %1745 = vmatprep.subr.bf16.mxu0 0
        %1746 = vmatpush2.bf16.msra.mxu0 0
        %1747 = vmatprep.subr.bf16.mxu0 0
        %1748 = vmatpush2.bf16.msra.mxu0 0
        %1749 = vmatprep.subr.bf16.mxu0 0
        %1750 = vmatpush2.bf16.msra.mxu0 0
        %1751 = vmatprep.subr.bf16.mxu0 0
        %1752 = vmatpush2.bf16.msra.mxu0 0
        %1753 = vmatprep.subr.bf16.mxu0 0
        %1754 = vmatpush2.bf16.msra.mxu0 0
        %1755 = vmatprep.subr.bf16.mxu0 0
        %1756 = vmatpush2.bf16.msra.mxu0 0
        %1757 = vmatprep.mubr.bf16.mxu0 0
        %1758 = vmatmul.mubr.bf16.gmra.mxu0 %v1723
        %v1759 = vpop.f32.mrf.mxu0
        %v1760 = vadd.f32 %v1695, %v1759
        %v1761 = vpop.f32.mrf.mxu0
        %v1762 = vpop.f32.mrf.mxu0
        %v1763 = vadd.f32 %v1695, %v1762
        %v1764 = vpop.f32.mrf.mxu0
        %1765 = vdwg.mxu0
        %v1766 = vadd.f32 %v1609, %v1760
        %v1767 = vadd.f32 %v1610, %v1763
        %v1768 = vld [vmem:[%s11] sm:$0x1]
        %v1769 = vld [vmem:[%s12] sm:$0x1]
        %v1770 = vsel %vm499, %v1766, 0.0
        %1771 = vadd.xlane.f32.xlu0 %v1770
        %v1772 = vpop.xlane.xlu0 %1771
        %v1773 = vsel %vm499, %v1767, 0.0
        %1774 = vadd.xlane.f32.xlu0 %v1773
        %v1775 = vpop.xlane.xlu0 %1774
        %v1776 = vmul.f32 %v1772, %v1574
        %v1777 = vmul.f32 %v1775, %v1574
        %v1778 = vsub.f32 %v1766, %v1776
        %v1779 = vsub.f32 %v1767, %v1777
        %v1780 = vmul.f32 %v1778, %v1778
        %v1781 = vmul.f32 %v1779, %v1779
        %v1782 = vsel %vm499, %v1780, 0.0
        %1783 = vadd.xlane.f32.xlu0 %v1782
        %v1784 = vpop.xlane.xlu0 %1783
        %v1785 = vsel %vm499, %v1781, 0.0
        %1786 = vadd.xlane.f32.xlu0 %v1785
        %v1787 = vpop.xlane.xlu0 %1786
        %v1788 = vmul.f32 %v1784, %v1574
        %v1789 = vmul.f32 %v1787, %v1574
        %v1790 = vadd.f32 %v1788, 1e-05
        %v1791 = vadd.f32 %v1789, 1e-05
        %v1792 = vrsqrt.pop %v1790
        %v1793 = vrsqrt.pop %v1791
        %v1794 = vmul.f32 %v1778, %v1792
        %v1795 = vmul.f32 %v1779, %v1793
        %v1797 = vlaneseq
        %v1798 = vshrl.u32 %v1797, 7
        %v1799 = vsub.s32 0, %v1798
        %v1800 = vrot.slane %v1768, %v1799
        %v1802 = vmul.f32 %v1794, %v1800
        %v1803 = vmul.f32 %v1795, %v1800
        %v1805 = vlaneseq
        %v1806 = vshrl.u32 %v1805, 7
        %v1807 = vsub.s32 0, %v1806
        %v1808 = vrot.slane %v1769, %v1807
        %v1810 = vadd.f32 %v1802, %v1808
        %v1811 = vadd.f32 %v1803, %v1808
        %1812 = vst.msk [vmem:[%s464] sm:$0xff] %vm499, %v1810
        %1813 = vst.msk [vmem:[%s464 + $0x8] sm:$0xff] %vm499, %v1811
        %s1814 = sand.u32 %s315, 1
        %s1815 = scalar_lea.sflag [#allocation5], %s1814
        %s1816 = sand.u32 %s315, 1
        %s1817 = smul.addr %s1816, 16
        %s1818 = scalar_lea.vmem [#allocation8], %s1817
        // Predicated region
        $region81: #{tpu_custom_call.1} parent=71 // pred_check
          %p1819 = pneg %p325
        $region82: #{tpu_custom_call.1} parent=71 // pred_check_branch
          %1821 = sbr.rel (%p1819) target = $region84
        $region83: #{tpu_custom_call.1} parent=71 // pred_region
          %s1822 = smul.u32 2, %s29
          %s1824 = ssub.s32 256, 256
          %1825 = vsyncadd %s1815, %s1824
          %s1826 = smul.addr %s1822, 128
          %s1827 = scalar_lea.hbm %s13, %s1826
          %s1828 = sshll.u32 %s1818, 4
          %s1829 = int_to_ptr.vmem [resolvable:$true] %s1828
          %1834 = dma.vmem_to_hbm [thread:$0]  %s1829, 256, %s1827, %s1815, 128, 128, 8
        $region84: #{tpu_custom_call.1} parent=71 // pred_fallthru
          _
      $region72: #{tpu_custom_call.1} parent=5 // pred_fallthru
        _
      %p1835 = scmp.le.s32.totalorder 2, %s24
      // Predicated region
      $region85: #{tpu_custom_call.1} parent=5 // pred_check
        %p1836 = pneg %p1835
      $region86: #{tpu_custom_call.1} parent=5 // pred_check_branch
        %1838 = sbr.rel (%p1836) target = $region88
      $region87: #{tpu_custom_call.1} parent=5 // pred_region
        %s1839 = ssub.s32 %s24, 2
        // Predicated region
        $region89: #{tpu_custom_call.1} parent=87 // pred_check
          %p1840 = pneg %p331
        $region90: #{tpu_custom_call.1} parent=87 // pred_check_branch
          %1842 = sbr.rel (%p1840) target = $region92
        $region91: #{tpu_custom_call.1} parent=87 // pred_region
          %s1843 = sand.u32 %s316, 1
          %s1844 = scalar_lea.sflag [#allocation5], %s1843
          %s1845 = sand.u32 %s316, 1
          %s1846 = smul.addr %s1845, 16
          %s1847 = scalar_lea.vmem [#allocation8], %s1846
          %1848 = dma.done %s1844, 256
        $region92: #{tpu_custom_call.1} parent=87 // pred_fallthru
          _
      $region88: #{tpu_custom_call.1} parent=5 // pred_fallthru
        _
    $region6: #{tpu_custom_call.1} parent=1 // loop_footer
      %s28 = sadd.s32 1, %s24
    $region7: #{tpu_custom_call.1} parent=1 // loop_footer_branch
      %23 = sbr.rel target = $region3
    $region8: #{tpu_custom_call.1} parent=1 // loop_exit
      _
    %1849 = vsyncpa [#allocation4], 1
    %s1850 = scalar_lea.sflag [#allocation4], 1
    %1851 = vsyncpa %s1850, 1
    %1852 = vsyncpa [#allocation7], 1
    %1853 = vsyncpa [#allocation5], 1
    %s1854 = scalar_lea.sflag [#allocation5], 1
    %1855 = vsyncpa %s1854, 1

</llo_original>
